<compile_context>
chip_gen: v6e
topology: v6e:2x2x1
jax: 0.10.0
libtpu: 0.0.40
codegen_flags: <defaults>
</compile_context>

<pallas_src>
import functools

import jax
import jax.numpy as jnp
from jax.experimental import pallas as pl
from jax.experimental.pallas import tpu as pltpu

TRAJ_LEN = 50   # 1 initial encoded state + 49 Koopman steps
LANE = 128      # lane width for lane-dense slabs / output


def _round_up(x, m):
    return (x + m - 1) // m * m


def koopman_kernel(enc_meta, dec_meta, k_off, latent, traj_len, batch_pad,
                   x_ref, w_ref, b_ref, out_ref):
    """enc_meta/dec_meta: tuples of (w_row_offset, in_dim, out_dim, bias_row)."""

    def mlp(z, meta):
        n = len(meta)
        for i, (off, din, dout, brow) in enumerate(meta):
            w = w_ref[off:off + din, :dout]          # static sub-slice of the slab
            b = b_ref[brow:brow + 1, :dout]          # (1, dout), broadcasts
            z = jnp.dot(z, w, preferred_element_type=jnp.float32) + b
            if i < n - 1:                            # ReLU on all but last layer
                z = jnp.maximum(z, 0.0)
        return z

    # ---------------- Encoder ----------------
    z = mlp(x_ref[...], enc_meta)                    # (B_pad, latent), timestep 0

    # ---- Koopman rollout: log-depth doubling, K-squaring fused into the ----
    # ---- propagation matmul, trajectory kept as a traced value.          ----
    # Row layout of z: t-major, batch-minor (row t*B_pad + b).
    p = w_ref[k_off:k_off + latent, :latent]          # K^n, starting at n = 1
    n = 1
    while n < traj_len:                               # unrolled at trace time (~6 iters)
        take = min(n, traj_len - n)
        cur = z if take == n else z[0:take * batch_pad, :]   # 8-aligned slice
        stacked = jnp.concatenate([cur, p], axis=0)           # [Z[0:take] ; K^n]
        res = jnp.dot(stacked, p, preferred_element_type=jnp.float32)
        z = jnp.concatenate([z, res[0:take * batch_pad, :]], axis=0)  # += t=n..n+take-1
        p = res[take * batch_pad:take * batch_pad + latent, :]        # K^(2n)
        n += take

    # -------- Decoder, applied to all traj_len*B_pad latent states at once ----
    # Last decoder layer is lane-padded to 128 -> unmasked lane-dense store.
    out_ref[...] = mlp(z, dec_meta)                   # (traj_len*B_pad, 128)


def pack_params(enc_ws, enc_bs, k_w_t, dec_ws, dec_bs):
    """Pack all (in,out) weights into one lane-dense slab + biases into another."""
    ws = list(enc_ws) + list(dec_ws) + [k_w_t]
    bs = list(enc_bs) + list(dec_bs)
    width = _round_up(max(max(w.shape[1] for w in ws), LANE), LANE)

    blocks, offsets, off = [], [], 0
    for w in ws:
        din, dout = w.shape
        offsets.append(off)
        blk = jnp.pad(w, ((0, _round_up(din, 8) - din), (0, width - dout)))
        blocks.append(blk)
        off += blk.shape[0]
    wpack = jnp.concatenate(blocks, axis=0)

    bpack = jnp.concatenate(
        [jnp.pad(jnp.reshape(b, (1, -1)), ((0, 0), (0, width - b.shape[-1])))
         for b in bs], axis=0)

    n_enc, n_dec = len(enc_ws), len(dec_ws)
    enc_meta = tuple((offsets[i], ws[i].shape[0], ws[i].shape[1], i)
                     for i in range(n_enc))
    dec_meta = []
    for i in range(n_dec):
        j = n_enc + i
        # Last decoder layer: use the full padded lane width so the output store
        # is lane-dense (padding columns are exactly zero).
        dout = ws[j].shape[1] if i < n_dec - 1 else width
        dec_meta.append((offsets[j], ws[j].shape[0], dout, j))
    return wpack, bpack, enc_meta, tuple(dec_meta), offsets[-1], width


def koopman_forward(x, enc_ws, enc_bs, k_w_t, dec_ws, dec_bs):
    """x: (B, inputSize). Returns (TRAJ_LEN, B, inputSize) trajectory."""
    B, input_size = x.shape
    latent = k_w_t.shape[0]
    b_pad = _round_up(B, 8)

    wpack, bpack, enc_meta, dec_meta, k_off, width = pack_params(
        enc_ws, enc_bs, k_w_t, dec_ws, dec_bs)
    x_pad = jnp.pad(x, ((0, b_pad - B), (0, 0)))      # padded rows are inert

    vmem = pl.BlockSpec(memory_space=pltpu.MemorySpace.VMEM)
    flat = pl.pallas_call(
        functools.partial(koopman_kernel, enc_meta, dec_meta, k_off, latent,
                          TRAJ_LEN, b_pad),
        out_shape=jax.ShapeDtypeStruct((TRAJ_LEN * b_pad, width), jnp.float32),
        in_specs=[vmem, vmem, vmem],
        out_specs=vmem,
    )(x_pad, wpack, bpack)
    # Free metadata reshape + cheap slice outside the kernel (kernel store
    # stays fully lane/sublane dense).
    return flat.reshape(TRAJ_LEN, b_pad, width)[:, :B, :input_size]


# ---------------- deterministic parameter construction ----------------
def make_params(key, input_size, hidden_size, hidden_layer, latent_size):
    def linear(key, fan_in, fan_out):
        kw, kb = jax.random.split(key)
        bound = 1.0 / jnp.sqrt(fan_in)
        w = jax.random.uniform(kw, (fan_in, fan_out), jnp.float32, -bound, bound)
        b = jax.random.uniform(kb, (1, fan_out), jnp.float32, -bound, bound)
        return w, b

    enc_dims = [(input_size, hidden_size)] + \
               [(hidden_size, hidden_size)] * hidden_layer + \
               [(hidden_size, latent_size)]
    dec_dims = [(latent_size, hidden_size)] + \
               [(hidden_size, hidden_size)] * hidden_layer + \
               [(hidden_size, input_size)]

    keys = jax.random.split(key, len(enc_dims) + len(dec_dims) + 1)
    enc = [linear(keys[i], *d) for i, d in enumerate(enc_dims)]
    dec = [linear(keys[len(enc_dims) + i], *d) for i, d in enumerate(dec_dims)]
    bound = 1.0 / jnp.sqrt(latent_size)
    k_w_t = jax.random.uniform(keys[-1], (latent_size, latent_size),
                               jnp.float32, -bound, bound)  # already (in, out)
    enc_ws, enc_bs = [w for w, _ in enc], [b for _, b in enc]
    dec_ws, dec_bs = [w for w, _ in dec], [b for _, b in dec]
    return enc_ws, enc_bs, k_w_t, dec_ws, dec_bs


# ---------------- pure-JAX reference (faithful sequential rollout) ----------
def reference_forward(x, enc_ws, enc_bs, k_w_t, dec_ws, dec_bs):
    def mlp(z, ws, bs):
        for i, (w, b) in enumerate(zip(ws, bs)):
            z = z @ w + b
            if i < len(ws) - 1:
                z = jnp.maximum(z, 0.0)
        return z

    z = mlp(x, enc_ws, enc_bs)
    lat = [z]
    for _ in range(TRAJ_LEN - 1):
        lat.append(lat[-1] @ k_w_t)
    return jnp.stack([mlp(zt, dec_ws, dec_bs) for zt in lat], axis=0)


if __name__ == "__main__":
    # module hyper-parameters (params dict of the PyTorch module)
    input_size, hidden_size, hidden_layer, latent_size = 16, 32, 2, 8
    batch = 2

    key = jax.random.PRNGKey(0)
    kx, kp = jax.random.split(key)
    x = jax.random.normal(kx, (batch, input_size), jnp.float32)
    enc_ws, enc_bs, k_w_t, dec_ws, dec_bs = make_params(
        kp, input_size, hidden_size, hidden_layer, latent_size)

    out = koopman_forward(x, enc_ws, enc_bs, k_w_t, dec_ws, dec_bs)
    out = jax.block_until_ready(out)

    ref = reference_forward(x, enc_ws, enc_bs, k_w_t, dec_ws, dec_bs)
    assert out.shape == (TRAJ_LEN, batch, input_size)
    # log-depth doubling reorders the K-power products -> tiny fp differences
    # vs the strictly sequential reference rollout.
    assert jnp.allclose(out, ref, atol=3e-4, rtol=3e-4), "mismatch vs reference"

    print("KERNEL_OK")
</pallas_src>

<mosaic_0001>
module attributes {stable_mosaic.version = 11 : i64} {
  func.func @koopman_kernel(%arg0: memref<8x16xf32, #tpu.memory_space<vmem>>, %arg1: memref<224x128xf32, #tpu.memory_space<vmem>>, %arg2: memref<8x128xf32, #tpu.memory_space<vmem>>, %arg3: memref<400x128xf32, #tpu.memory_space<vmem>>) attributes {dimension_semantics = [], scalar_prefetch = 0 : i64, scratch_operands = 0 : i64, tpu.core_type = #tpu.core_type<tc>} {
    %c0 = arith.constant 0 : index
    %c0_0 = arith.constant 0 : index
    %0 = vector.load %arg0[%c0, %c0_0] : memref<8x16xf32, #tpu.memory_space<vmem>>, vector<8x16xf32>
    %c0_1 = arith.constant 0 : index
    %c0_2 = arith.constant 0 : index
    %1 = vector.load %arg1[%c0_1, %c0_2] : memref<224x128xf32, #tpu.memory_space<vmem>>, vector<16x32xf32>
    %c0_3 = arith.constant 0 : index
    %c0_4 = arith.constant 0 : index
    %2 = vector.load %arg2[%c0_3, %c0_4] : memref<8x128xf32, #tpu.memory_space<vmem>>, vector<1x32xf32>
    %cst = arith.constant dense<0.000000e+00> : vector<8x32xf32>
    %3 = tpu.matmul %0, %1, %cst {dimension_numbers = #tpu.dot_dimension_numbers<[1], [0], [0], [1], [0, 0, 1, 1], [], []>} : vector<8x16xf32>, vector<16x32xf32>, vector<8x32xf32> -> vector<8x32xf32>
    %4 = vector.broadcast %2 : vector<1x32xf32> to vector<8x32xf32>
    %5 = arith.addf %3, %4 : vector<8x32xf32>
    %cst_5 = arith.constant 0.000000e+00 : f32
    %6 = vector.broadcast %cst_5 : f32 to vector<8x32xf32>
    %7 = arith.maximumf %5, %6 : vector<8x32xf32>
    %c16 = arith.constant 16 : index
    %c0_6 = arith.constant 0 : index
    %8 = vector.load %arg1[%c16, %c0_6] : memref<224x128xf32, #tpu.memory_space<vmem>>, vector<32x32xf32>
    %c1 = arith.constant 1 : index
    %c0_7 = arith.constant 0 : index
    %9 = vector.load %arg2[%c1, %c0_7] : memref<8x128xf32, #tpu.memory_space<vmem>>, vector<1x32xf32>
    %cst_8 = arith.constant dense<0.000000e+00> : vector<8x32xf32>
    %10 = tpu.matmul %7, %8, %cst_8 {dimension_numbers = #tpu.dot_dimension_numbers<[1], [0], [0], [1], [0, 0, 1, 1], [], []>} : vector<8x32xf32>, vector<32x32xf32>, vector<8x32xf32> -> vector<8x32xf32>
    %11 = vector.broadcast %9 : vector<1x32xf32> to vector<8x32xf32>
    %12 = arith.addf %10, %11 : vector<8x32xf32>
    %cst_9 = arith.constant 0.000000e+00 : f32
    %13 = vector.broadcast %cst_9 : f32 to vector<8x32xf32>
    %14 = arith.maximumf %12, %13 : vector<8x32xf32>
    %c48 = arith.constant 48 : index
    %c0_10 = arith.constant 0 : index
    %15 = vector.load %arg1[%c48, %c0_10] : memref<224x128xf32, #tpu.memory_space<vmem>>, vector<32x32xf32>
    %c2 = arith.constant 2 : index
    %c0_11 = arith.constant 0 : index
    %16 = vector.load %arg2[%c2, %c0_11] : memref<8x128xf32, #tpu.memory_space<vmem>>, vector<1x32xf32>
    %cst_12 = arith.constant dense<0.000000e+00> : vector<8x32xf32>
    %17 = tpu.matmul %14, %15, %cst_12 {dimension_numbers = #tpu.dot_dimension_numbers<[1], [0], [0], [1], [0, 0, 1, 1], [], []>} : vector<8x32xf32>, vector<32x32xf32>, vector<8x32xf32> -> vector<8x32xf32>
    %18 = vector.broadcast %16 : vector<1x32xf32> to vector<8x32xf32>
    %19 = arith.addf %17, %18 : vector<8x32xf32>
    %cst_13 = arith.constant 0.000000e+00 : f32
    %20 = vector.broadcast %cst_13 : f32 to vector<8x32xf32>
    %21 = arith.maximumf %19, %20 : vector<8x32xf32>
    %c80 = arith.constant 80 : index
    %c0_14 = arith.constant 0 : index
    %22 = vector.load %arg1[%c80, %c0_14] : memref<224x128xf32, #tpu.memory_space<vmem>>, vector<32x8xf32>
    %c3 = arith.constant 3 : index
    %c0_15 = arith.constant 0 : index
    %23 = vector.load %arg2[%c3, %c0_15] : memref<8x128xf32, #tpu.memory_space<vmem>>, vector<1x8xf32>
    %cst_16 = arith.constant dense<0.000000e+00> : vector<8x8xf32>
    %24 = tpu.matmul %21, %22, %cst_16 {dimension_numbers = #tpu.dot_dimension_numbers<[1], [0], [0], [1], [0, 0, 1, 1], [], []>} : vector<8x32xf32>, vector<32x8xf32>, vector<8x8xf32> -> vector<8x8xf32>
    %25 = vector.broadcast %23 : vector<1x8xf32> to vector<8x8xf32>
    %26 = arith.addf %24, %25 : vector<8x8xf32>
    %c216 = arith.constant 216 : index
    %c0_17 = arith.constant 0 : index
    %27 = vector.load %arg1[%c216, %c0_17] : memref<224x128xf32, #tpu.memory_space<vmem>>, vector<8x8xf32>
    %28 = tpu.concatenate %26, %27 in 0 : vector<8x8xf32>, vector<8x8xf32> -> vector<16x8xf32>
    %cst_18 = arith.constant dense<0.000000e+00> : vector<16x8xf32>
    %29 = tpu.matmul %28, %27, %cst_18 {dimension_numbers = #tpu.dot_dimension_numbers<[1], [0], [0], [1], [0, 0, 1, 1], [], []>} : vector<16x8xf32>, vector<8x8xf32>, vector<16x8xf32> -> vector<16x8xf32>
    %30 = vector.extract_strided_slice %29 {offsets = [0, 0], sizes = [8, 8], strides = [1, 1]} : vector<16x8xf32> to vector<8x8xf32>
    %31 = tpu.concatenate %26, %30 in 0 : vector<8x8xf32>, vector<8x8xf32> -> vector<16x8xf32>
    %32 = vector.extract_strided_slice %29 {offsets = [8, 0], sizes = [8, 8], strides = [1, 1]} : vector<16x8xf32> to vector<8x8xf32>
    %33 = tpu.concatenate %31, %32 in 0 : vector<16x8xf32>, vector<8x8xf32> -> vector<24x8xf32>
    %cst_19 = arith.constant dense<0.000000e+00> : vector<24x8xf32>
    %34 = tpu.matmul %33, %32, %cst_19 {dimension_numbers = #tpu.dot_dimension_numbers<[1], [0], [0], [1], [0, 0, 1, 1], [], []>} : vector<24x8xf32>, vector<8x8xf32>, vector<24x8xf32> -> vector<24x8xf32>
    %35 = vector.extract_strided_slice %34 {offsets = [0, 0], sizes = [16, 8], strides = [1, 1]} : vector<24x8xf32> to vector<16x8xf32>
    %36 = tpu.concatenate %31, %35 in 0 : vector<16x8xf32>, vector<16x8xf32> -> vector<32x8xf32>
    %37 = vector.extract_strided_slice %34 {offsets = [16, 0], sizes = [8, 8], strides = [1, 1]} : vector<24x8xf32> to vector<8x8xf32>
    %38 = tpu.concatenate %36, %37 in 0 : vector<32x8xf32>, vector<8x8xf32> -> vector<40x8xf32>
    %cst_20 = arith.constant dense<0.000000e+00> : vector<40x8xf32>
    %39 = tpu.matmul %38, %37, %cst_20 {dimension_numbers = #tpu.dot_dimension_numbers<[1], [0], [0], [1], [0, 0, 1, 1], [], []>} : vector<40x8xf32>, vector<8x8xf32>, vector<40x8xf32> -> vector<40x8xf32>
    %40 = vector.extract_strided_slice %39 {offsets = [0, 0], sizes = [32, 8], strides = [1, 1]} : vector<40x8xf32> to vector<32x8xf32>
    %41 = tpu.concatenate %36, %40 in 0 : vector<32x8xf32>, vector<32x8xf32> -> vector<64x8xf32>
    %42 = vector.extract_strided_slice %39 {offsets = [32, 0], sizes = [8, 8], strides = [1, 1]} : vector<40x8xf32> to vector<8x8xf32>
    %43 = tpu.concatenate %41, %42 in 0 : vector<64x8xf32>, vector<8x8xf32> -> vector<72x8xf32>
    %cst_21 = arith.constant dense<0.000000e+00> : vector<72x8xf32>
    %44 = tpu.matmul %43, %42, %cst_21 {dimension_numbers = #tpu.dot_dimension_numbers<[1], [0], [0], [1], [0, 0, 1, 1], [], []>} : vector<72x8xf32>, vector<8x8xf32>, vector<72x8xf32> -> vector<72x8xf32>
    %45 = vector.extract_strided_slice %44 {offsets = [0, 0], sizes = [64, 8], strides = [1, 1]} : vector<72x8xf32> to vector<64x8xf32>
    %46 = tpu.concatenate %41, %45 in 0 : vector<64x8xf32>, vector<64x8xf32> -> vector<128x8xf32>
    %47 = vector.extract_strided_slice %44 {offsets = [64, 0], sizes = [8, 8], strides = [1, 1]} : vector<72x8xf32> to vector<8x8xf32>
    %48 = tpu.concatenate %46, %47 in 0 : vector<128x8xf32>, vector<8x8xf32> -> vector<136x8xf32>
    %cst_22 = arith.constant dense<0.000000e+00> : vector<136x8xf32>
    %49 = tpu.matmul %48, %47, %cst_22 {dimension_numbers = #tpu.dot_dimension_numbers<[1], [0], [0], [1], [0, 0, 1, 1], [], []>} : vector<136x8xf32>, vector<8x8xf32>, vector<136x8xf32> -> vector<136x8xf32>
    %50 = vector.extract_strided_slice %49 {offsets = [0, 0], sizes = [128, 8], strides = [1, 1]} : vector<136x8xf32> to vector<128x8xf32>
    %51 = tpu.concatenate %46, %50 in 0 : vector<128x8xf32>, vector<128x8xf32> -> vector<256x8xf32>
    %52 = vector.extract_strided_slice %49 {offsets = [128, 0], sizes = [8, 8], strides = [1, 1]} : vector<136x8xf32> to vector<8x8xf32>
    %53 = vector.extract_strided_slice %51 {offsets = [0, 0], sizes = [144, 8], strides = [1, 1]} : vector<256x8xf32> to vector<144x8xf32>
    %54 = tpu.concatenate %53, %52 in 0 : vector<144x8xf32>, vector<8x8xf32> -> vector<152x8xf32>
    %cst_23 = arith.constant dense<0.000000e+00> : vector<152x8xf32>
    %55 = tpu.matmul %54, %52, %cst_23 {dimension_numbers = #tpu.dot_dimension_numbers<[1], [0], [0], [1], [0, 0, 1, 1], [], []>} : vector<152x8xf32>, vector<8x8xf32>, vector<152x8xf32> -> vector<152x8xf32>
    %56 = vector.extract_strided_slice %55 {offsets = [0, 0], sizes = [144, 8], strides = [1, 1]} : vector<152x8xf32> to vector<144x8xf32>
    %57 = tpu.concatenate %51, %56 in 0 : vector<256x8xf32>, vector<144x8xf32> -> vector<400x8xf32>
    %c112 = arith.constant 112 : index
    %c0_24 = arith.constant 0 : index
    %58 = vector.load %arg1[%c112, %c0_24] : memref<224x128xf32, #tpu.memory_space<vmem>>, vector<8x32xf32>
    %c4 = arith.constant 4 : index
    %c0_25 = arith.constant 0 : index
    %59 = vector.load %arg2[%c4, %c0_25] : memref<8x128xf32, #tpu.memory_space<vmem>>, vector<1x32xf32>
    %cst_26 = arith.constant dense<0.000000e+00> : vector<400x32xf32>
    %60 = tpu.matmul %57, %58, %cst_26 {dimension_numbers = #tpu.dot_dimension_numbers<[1], [0], [0], [1], [0, 0, 1, 1], [], []>} : vector<400x8xf32>, vector<8x32xf32>, vector<400x32xf32> -> vector<400x32xf32>
    %61 = vector.broadcast %59 : vector<1x32xf32> to vector<400x32xf32>
    %62 = arith.addf %60, %61 : vector<400x32xf32>
    %cst_27 = arith.constant 0.000000e+00 : f32
    %63 = vector.broadcast %cst_27 : f32 to vector<400x32xf32>
    %64 = arith.maximumf %62, %63 : vector<400x32xf32>
    %c120 = arith.constant 120 : index
    %c0_28 = arith.constant 0 : index
    %65 = vector.load %arg1[%c120, %c0_28] : memref<224x128xf32, #tpu.memory_space<vmem>>, vector<32x32xf32>
    %c5 = arith.constant 5 : index
    %c0_29 = arith.constant 0 : index
    %66 = vector.load %arg2[%c5, %c0_29] : memref<8x128xf32, #tpu.memory_space<vmem>>, vector<1x32xf32>
    %cst_30 = arith.constant dense<0.000000e+00> : vector<400x32xf32>
    %67 = tpu.matmul %64, %65, %cst_30 {dimension_numbers = #tpu.dot_dimension_numbers<[1], [0], [0], [1], [0, 0, 1, 1], [], []>} : vector<400x32xf32>, vector<32x32xf32>, vector<400x32xf32> -> vector<400x32xf32>
    %68 = vector.broadcast %66 : vector<1x32xf32> to vector<400x32xf32>
    %69 = arith.addf %67, %68 : vector<400x32xf32>
    %cst_31 = arith.constant 0.000000e+00 : f32
    %70 = vector.broadcast %cst_31 : f32 to vector<400x32xf32>
    %71 = arith.maximumf %69, %70 : vector<400x32xf32>
    %c152 = arith.constant 152 : index
    %c0_32 = arith.constant 0 : index
    %72 = vector.load %arg1[%c152, %c0_32] : memref<224x128xf32, #tpu.memory_space<vmem>>, vector<32x32xf32>
    %c6 = arith.constant 6 : index
    %c0_33 = arith.constant 0 : index
    %73 = vector.load %arg2[%c6, %c0_33] : memref<8x128xf32, #tpu.memory_space<vmem>>, vector<1x32xf32>
    %cst_34 = arith.constant dense<0.000000e+00> : vector<400x32xf32>
    %74 = tpu.matmul %71, %72, %cst_34 {dimension_numbers = #tpu.dot_dimension_numbers<[1], [0], [0], [1], [0, 0, 1, 1], [], []>} : vector<400x32xf32>, vector<32x32xf32>, vector<400x32xf32> -> vector<400x32xf32>
    %75 = vector.broadcast %73 : vector<1x32xf32> to vector<400x32xf32>
    %76 = arith.addf %74, %75 : vector<400x32xf32>
    %cst_35 = arith.constant 0.000000e+00 : f32
    %77 = vector.broadcast %cst_35 : f32 to vector<400x32xf32>
    %78 = arith.maximumf %76, %77 : vector<400x32xf32>
    %c184 = arith.constant 184 : index
    %c0_36 = arith.constant 0 : index
    %79 = vector.load %arg1[%c184, %c0_36] : memref<224x128xf32, #tpu.memory_space<vmem>>, vector<32x128xf32>
    %c7 = arith.constant 7 : index
    %c0_37 = arith.constant 0 : index
    %80 = vector.load %arg2[%c7, %c0_37] : memref<8x128xf32, #tpu.memory_space<vmem>>, vector<1x128xf32>
    %cst_38 = arith.constant dense<0.000000e+00> : vector<400x128xf32>
    %81 = tpu.matmul %78, %79, %cst_38 {dimension_numbers = #tpu.dot_dimension_numbers<[1], [0], [0], [1], [0, 0, 1, 1], [], []>} : vector<400x32xf32>, vector<32x128xf32>, vector<400x128xf32> -> vector<400x128xf32>
    %82 = vector.broadcast %80 : vector<1x128xf32> to vector<400x128xf32>
    %83 = arith.addf %81, %82 : vector<400x128xf32>
    %c0_39 = arith.constant 0 : index
    %c0_40 = arith.constant 0 : index
    %84 = vector.load %arg3[%c0_39, %c0_40] : memref<400x128xf32, #tpu.memory_space<vmem>>, vector<400x128xf32>
    tpu.vector_store %arg3[%c0_39, %c0_40], %83 {strides = array<i32>} : memref<400x128xf32, #tpu.memory_space<vmem>>, vector<400x128xf32>,
    return
  }
}

</mosaic_0001>

<llo_original>
// kernel: tpu_custom_call.1
$region0: #{tpu_custom_call.1}
  #allocation0 [shape = 'u32[]', space=smem, size = 0x4, offset = 0x4, fixed_abs, tag = 'smem constant byte address 0x4 - core index']
  #allocation1 [shape = 'u32[144,128]{1,0:T(1,128)}', space=vmem, size = 0x12000, scoped, tag = 'internal scratch']
  %s0 = inlined_call_operand.hbm [shape: f32[8,16], index: 0, kind: input, shape index: {}]
  %s1 = inlined_call_operand.hbm [shape: f32[224,128], index: 1, kind: input, shape index: {}]
  %s2 = inlined_call_operand.hbm [shape: f32[8,128], index: 2, kind: input, shape index: {}]
  %s3 = inlined_call_operand.hbm [shape: f32[400,128], index: 3, kind: output, shape index: {}]
  %s4 = sld [smem:[#allocation0]]
  $region34: #{tpu_custom_call.1} parent=0
    _
  %s6 = ssub.s32 1, %s4
  %s7 = scalar_select 0, %s6, %s4
  $region1: #{tpu_custom_call.1} parent=0
    #allocation2 [shape = 'u8[4096]{0}', space=vmem, size = 0x1000, scoped, tag = 'input window, operand 0, single buffered']
    #allocation3 [shape = 's32[1]{0}', space=sflag, size = 0x4, scoped, tag = 'scoped memory for tpu_custom_call.1']
    #allocation4 [shape = 's32[1]{0}', space=sflag, size = 0x4, scoped, tag = 'scoped memory for tpu_custom_call.1']
    #allocation5 [shape = 'u8[114688]{0}', space=vmem, size = 0x1c000, scoped, tag = 'input window, operand 1, single buffered']
    #allocation6 [shape = 's32[1]{0}', space=sflag, size = 0x4, scoped, tag = 'scoped memory for tpu_custom_call.1']
    #allocation7 [shape = 'u8[4096]{0}', space=vmem, size = 0x1000, scoped, tag = 'input window, operand 2, single buffered']
    #allocation8 [shape = 'u8[204800]{0}', space=vmem, size = 0x32000, scoped, tag = 'output window, operand 0, single buffered']
    %8 = vsyncpa [#allocation3], 0
    %9 = vsyncpa [#allocation6], 0
    %10 = vsyncpa [#allocation4], 0
    // Predicated region
    $region2: #{tpu_custom_call.1} parent=1 // pred_check
      _
    $region3: #{tpu_custom_call.1} parent=1 // pred_check_branch
      %12 = sbr.rel (0) target = $region5
    $region4: #{tpu_custom_call.1} parent=1 // pred_region
      %s14 = ssub.s32 128, 128
      %15 = vsyncadd [#allocation3], %s14
      %s17 = sshll.u32 [#allocation2], 4
      %s18 = int_to_ptr.vmem [resolvable:$true] %s17
      %20 = dma.hbm_to_vmem [thread:$0]  %s0, 128, %s18, [#allocation3]
    $region5: #{tpu_custom_call.1} parent=1 // pred_fallthru
      _
    // Predicated region
    $region6: #{tpu_custom_call.1} parent=1 // pred_check
      _
    $region7: #{tpu_custom_call.1} parent=1 // pred_check_branch
      %22 = sbr.rel (0) target = $region9
    $region8: #{tpu_custom_call.1} parent=1 // pred_region
      %s24 = ssub.s32 3584, 3584
      %25 = vsyncadd [#allocation6], %s24
      %s26 = sshll.u32 [#allocation5], 4
      %s27 = int_to_ptr.vmem [resolvable:$true] %s26
      %32 = dma.hbm_to_vmem [thread:$0]  %s1, 3584, %s27, [#allocation6], 128, 128, 8
    $region9: #{tpu_custom_call.1} parent=1 // pred_fallthru
      _
    // Predicated region
    $region10: #{tpu_custom_call.1} parent=1 // pred_check
      _
    $region11: #{tpu_custom_call.1} parent=1 // pred_check_branch
      %34 = sbr.rel (0) target = $region13
    $region12: #{tpu_custom_call.1} parent=1 // pred_region
      %s36 = ssub.s32 128, 128
      %37 = vsyncadd [#allocation6], %s36
      %s39 = sshll.u32 [#allocation7], 4
      %s40 = int_to_ptr.vmem [resolvable:$true] %s39
      %42 = dma.hbm_to_vmem [thread:$0]  %s2, 128, %s40, [#allocation6]
    $region13: #{tpu_custom_call.1} parent=1 // pred_fallthru
      _
    // Predicated region
    $region14: #{tpu_custom_call.1} parent=1 // pred_check
      _
    $region15: #{tpu_custom_call.1} parent=1 // pred_check_branch
      %44 = sbr.rel (0) target = $region17
    $region16: #{tpu_custom_call.1} parent=1 // pred_region
      %45 = dma.done [#allocation3], 128
    $region17: #{tpu_custom_call.1} parent=1 // pred_fallthru
      _
    // Predicated region
    $region18: #{tpu_custom_call.1} parent=1 // pred_check
      _
    $region19: #{tpu_custom_call.1} parent=1 // pred_check_branch
      %47 = sbr.rel (0) target = $region21
    $region20: #{tpu_custom_call.1} parent=1 // pred_region
      %48 = dma.done [#allocation6], 3584
    $region21: #{tpu_custom_call.1} parent=1 // pred_fallthru
      _
    // Predicated region
    $region22: #{tpu_custom_call.1} parent=1 // pred_check
      _
    $region23: #{tpu_custom_call.1} parent=1 // pred_check_branch
      %50 = sbr.rel (0) target = $region25
    $region24: #{tpu_custom_call.1} parent=1 // pred_region
      %51 = dma.done [#allocation6], 128
    $region25: #{tpu_custom_call.1} parent=1 // pred_fallthru
      _
    %v52 = vld [vmem:[#allocation2] sm:$0xff]
    %v53 = vld [vmem:[#allocation5] sm:$0xff]
    %v54 = vld [vmem:[#allocation5 + $0x8] sm:$0xff]
    %v55 = vld [vmem:[#allocation7] sm:$0x1]
    %v56 = vlaneseq
    %v57 = vshrl.u32 %v56, 7
    %v58 = vsub.s32 0, %v57
    %v59 = vrot.slane %v55, %v58
    %vm60 = vcmask 130048
    %v62 = vsel %vm60, %v52, 0
    %64 = vmatprep.subr.mxu0 0.0
    %65 = vmatpush1.msra.mxu0 0.0
    %66 = vmatprep.subr.mxu0 0.0
    %67 = vmatpush1.msra.mxu0 0.0
    %68 = vmatprep.subr.mxu0 0.0
    %69 = vmatpush1.msra.mxu0 0.0
    %70 = vmatprep.subr.mxu0 0.0
    %71 = vmatpush1.msra.mxu0 0.0
    %72 = vmatprep.subr.mxu0 0.0
    %73 = vmatpush1.msra.mxu0 0.0
    %74 = vmatprep.subr.mxu0 0.0
    %75 = vmatpush1.msra.mxu0 0.0
    %76 = vmatprep.subr.mxu0 0.0
    %77 = vmatpush1.msra.mxu0 0.0
    %78 = vmatprep.subr.mxu0 0.0
    %79 = vmatpush1.msra.mxu0 0.0
    %80 = vmatprep.subr.mxu0 0.0
    %81 = vmatpush1.msra.mxu0 0.0
    %82 = vmatprep.subr.mxu0 0.0
    %83 = vmatpush1.msra.mxu0 0.0
    %84 = vmatprep.subr.mxu0 0.0
    %85 = vmatpush1.msra.mxu0 0.0
    %86 = vmatprep.subr.mxu0 0.0
    %87 = vmatpush1.msra.mxu0 0.0
    %88 = vmatprep.subr.mxu0 0.0
    %89 = vmatpush1.msra.mxu0 0.0
    %90 = vmatprep.subr.mxu0 0.0
    %91 = vmatpush1.msra.mxu0 0.0
    %92 = vmatprep.subr.mxu0 0.0
    %93 = vmatpush1.msra.mxu0 %v54
    %94 = vmatprep.subr.mxu0 0.0
    %95 = vmatpush1.msra.mxu0 %v53
    %96 = vmatprep.subr.mxu0 0.0
    %97 = vmatpush2.msra.mxu0 0.0
    %98 = vmatprep.subr.mxu0 0.0
    %99 = vmatpush2.msra.mxu0 0.0
    %100 = vmatprep.subr.mxu0 0.0
    %101 = vmatpush2.msra.mxu0 0.0
    %102 = vmatprep.subr.mxu0 0.0
    %103 = vmatpush2.msra.mxu0 0.0
    %104 = vmatprep.subr.mxu0 0.0
    %105 = vmatpush2.msra.mxu0 0.0
    %106 = vmatprep.subr.mxu0 0.0
    %107 = vmatpush2.msra.mxu0 0.0
    %108 = vmatprep.subr.mxu0 0.0
    %109 = vmatpush2.msra.mxu0 0.0
    %110 = vmatprep.subr.mxu0 0.0
    %111 = vmatpush2.msra.mxu0 0.0
    %112 = vmatprep.subr.mxu0 0.0
    %113 = vmatpush2.msra.mxu0 0.0
    %114 = vmatprep.subr.mxu0 0.0
    %115 = vmatpush2.msra.mxu0 0.0
    %116 = vmatprep.subr.mxu0 0.0
    %117 = vmatpush2.msra.mxu0 0.0
    %118 = vmatprep.subr.mxu0 0.0
    %119 = vmatpush2.msra.mxu0 0.0
    %120 = vmatprep.subr.mxu0 0.0
    %121 = vmatpush2.msra.mxu0 0.0
    %122 = vmatprep.subr.mxu0 0.0
    %123 = vmatpush2.msra.mxu0 0.0
    %124 = vmatprep.subr.mxu0 0.0
    %125 = vmatpush2.msra.mxu0 0.0
    %126 = vmatprep.subr.mxu0 0.0
    %127 = vmatpush2.msra.mxu0 0.0
    %128 = vmatprep.mubr.f32.mxu0 0.0
    %129 = vmatmul.mubr.f32.gmra.mxu0 %v62
    %v130 = vpop.f32.mrf.mxu0
    %v131 = vadd.f32 %v59, %v130
    %v132 = vpop.f32.mrf.mxu0
    %133 = vdwg.mxu0
    %v134 = vmax.f32 %v131, 0.0
    %v135 = vld [vmem:[#allocation5 + $0x10] sm:$0xff]
    %v136 = vld [vmem:[#allocation5 + $0x18] sm:$0xff]
    %v137 = vld [vmem:[#allocation5 + $0x20] sm:$0xff]
    %v138 = vld [vmem:[#allocation5 + $0x28] sm:$0xff]
    %v139 = vld [vmem:[#allocation7 + $0x1] sm:$0x1]
    %v140 = vlaneseq
    %v141 = vshrl.u32 %v140, 7
    %v142 = vsub.s32 0, %v141
    %v143 = vrot.slane %v139, %v142
    %vm144 = vcmask 261120
    %v146 = vsel %vm144, %v134, 0
    %148 = vmatprep.subr.mxu0 0.0
    %149 = vmatpush1.msra.mxu0 0.0
    %150 = vmatprep.subr.mxu0 0.0
    %151 = vmatpush1.msra.mxu0 0.0
    %152 = vmatprep.subr.mxu0 0.0
    %153 = vmatpush1.msra.mxu0 0.0
    %154 = vmatprep.subr.mxu0 0.0
    %155 = vmatpush1.msra.mxu0 0.0
    %156 = vmatprep.subr.mxu0 0.0
    %157 = vmatpush1.msra.mxu0 0.0
    %158 = vmatprep.subr.mxu0 0.0
    %159 = vmatpush1.msra.mxu0 0.0
    %160 = vmatprep.subr.mxu0 0.0
    %161 = vmatpush1.msra.mxu0 0.0
    %162 = vmatprep.subr.mxu0 0.0
    %163 = vmatpush1.msra.mxu0 0.0
    %164 = vmatprep.subr.mxu0 0.0
    %165 = vmatpush1.msra.mxu0 0.0
    %166 = vmatprep.subr.mxu0 0.0
    %167 = vmatpush1.msra.mxu0 0.0
    %168 = vmatprep.subr.mxu0 0.0
    %169 = vmatpush1.msra.mxu0 0.0
    %170 = vmatprep.subr.mxu0 0.0
    %171 = vmatpush1.msra.mxu0 0.0
    %172 = vmatprep.subr.mxu0 0.0
    %173 = vmatpush1.msra.mxu0 %v138
    %174 = vmatprep.subr.mxu0 0.0
    %175 = vmatpush1.msra.mxu0 %v137
    %176 = vmatprep.subr.mxu0 0.0
    %177 = vmatpush1.msra.mxu0 %v136
    %178 = vmatprep.subr.mxu0 0.0
    %179 = vmatpush1.msra.mxu0 %v135
    %180 = vmatprep.subr.mxu0 0.0
    %181 = vmatpush2.msra.mxu0 0.0
    %182 = vmatprep.subr.mxu0 0.0
    %183 = vmatpush2.msra.mxu0 0.0
    %184 = vmatprep.subr.mxu0 0.0
    %185 = vmatpush2.msra.mxu0 0.0
    %186 = vmatprep.subr.mxu0 0.0
    %187 = vmatpush2.msra.mxu0 0.0
    %188 = vmatprep.subr.mxu0 0.0
    %189 = vmatpush2.msra.mxu0 0.0
    %190 = vmatprep.subr.mxu0 0.0
    %191 = vmatpush2.msra.mxu0 0.0
    %192 = vmatprep.subr.mxu0 0.0
    %193 = vmatpush2.msra.mxu0 0.0
    %194 = vmatprep.subr.mxu0 0.0
    %195 = vmatpush2.msra.mxu0 0.0
    %196 = vmatprep.subr.mxu0 0.0
    %197 = vmatpush2.msra.mxu0 0.0
    %198 = vmatprep.subr.mxu0 0.0
    %199 = vmatpush2.msra.mxu0 0.0
    %200 = vmatprep.subr.mxu0 0.0
    %201 = vmatpush2.msra.mxu0 0.0
    %202 = vmatprep.subr.mxu0 0.0
    %203 = vmatpush2.msra.mxu0 0.0
    %204 = vmatprep.subr.mxu0 0.0
    %205 = vmatpush2.msra.mxu0 0.0
    %206 = vmatprep.subr.mxu0 0.0
    %207 = vmatpush2.msra.mxu0 0.0
    %208 = vmatprep.subr.mxu0 0.0
    %209 = vmatpush2.msra.mxu0 0.0
    %210 = vmatprep.subr.mxu0 0.0
    %211 = vmatpush2.msra.mxu0 0.0
    %212 = vmatprep.mubr.f32.mxu0 0.0
    %213 = vmatmul.mubr.f32.gmra.mxu0 %v146
    %v214 = vpop.f32.mrf.mxu0
    %v215 = vadd.f32 %v143, %v214
    %v216 = vpop.f32.mrf.mxu0
    %217 = vdwg.mxu0
    %v218 = vmax.f32 %v215, 0.0
    %v219 = vld [vmem:[#allocation5 + $0x30] sm:$0xff]
    %v220 = vld [vmem:[#allocation5 + $0x38] sm:$0xff]
    %v221 = vld [vmem:[#allocation5 + $0x40] sm:$0xff]
    %v222 = vld [vmem:[#allocation5 + $0x48] sm:$0xff]
    %v223 = vld [vmem:[#allocation7 + $0x2] sm:$0x1]
    %v224 = vlaneseq
    %v225 = vshrl.u32 %v224, 7
    %v226 = vsub.s32 0, %v225
    %v227 = vrot.slane %v223, %v226
    %v229 = vsel %vm144, %v218, 0
    %231 = vmatprep.subr.mxu0 0.0
    %232 = vmatpush1.msra.mxu0 0.0
    %233 = vmatprep.subr.mxu0 0.0
    %234 = vmatpush1.msra.mxu0 0.0
    %235 = vmatprep.subr.mxu0 0.0
    %236 = vmatpush1.msra.mxu0 0.0
    %237 = vmatprep.subr.mxu0 0.0
    %238 = vmatpush1.msra.mxu0 0.0
    %239 = vmatprep.subr.mxu0 0.0
    %240 = vmatpush1.msra.mxu0 0.0
    %241 = vmatprep.subr.mxu0 0.0
    %242 = vmatpush1.msra.mxu0 0.0
    %243 = vmatprep.subr.mxu0 0.0
    %244 = vmatpush1.msra.mxu0 0.0
    %245 = vmatprep.subr.mxu0 0.0
    %246 = vmatpush1.msra.mxu0 0.0
    %247 = vmatprep.subr.mxu0 0.0
    %248 = vmatpush1.msra.mxu0 0.0
    %249 = vmatprep.subr.mxu0 0.0
    %250 = vmatpush1.msra.mxu0 0.0
    %251 = vmatprep.subr.mxu0 0.0
    %252 = vmatpush1.msra.mxu0 0.0
    %253 = vmatprep.subr.mxu0 0.0
    %254 = vmatpush1.msra.mxu0 0.0
    %255 = vmatprep.subr.mxu0 0.0
    %256 = vmatpush1.msra.mxu0 %v222
    %257 = vmatprep.subr.mxu0 0.0
    %258 = vmatpush1.msra.mxu0 %v221
    %259 = vmatprep.subr.mxu0 0.0
    %260 = vmatpush1.msra.mxu0 %v220
    %261 = vmatprep.subr.mxu0 0.0
    %262 = vmatpush1.msra.mxu0 %v219
    %263 = vmatprep.subr.mxu0 0.0
    %264 = vmatpush2.msra.mxu0 0.0
    %265 = vmatprep.subr.mxu0 0.0
    %266 = vmatpush2.msra.mxu0 0.0
    %267 = vmatprep.subr.mxu0 0.0
    %268 = vmatpush2.msra.mxu0 0.0
    %269 = vmatprep.subr.mxu0 0.0
    %270 = vmatpush2.msra.mxu0 0.0
    %271 = vmatprep.subr.mxu0 0.0
    %272 = vmatpush2.msra.mxu0 0.0
    %273 = vmatprep.subr.mxu0 0.0
    %274 = vmatpush2.msra.mxu0 0.0
    %275 = vmatprep.subr.mxu0 0.0
    %276 = vmatpush2.msra.mxu0 0.0
    %277 = vmatprep.subr.mxu0 0.0
    %278 = vmatpush2.msra.mxu0 0.0
    %279 = vmatprep.subr.mxu0 0.0
    %280 = vmatpush2.msra.mxu0 0.0
    %281 = vmatprep.subr.mxu0 0.0
    %282 = vmatpush2.msra.mxu0 0.0
    %283 = vmatprep.subr.mxu0 0.0
    %284 = vmatpush2.msra.mxu0 0.0
    %285 = vmatprep.subr.mxu0 0.0
    %286 = vmatpush2.msra.mxu0 0.0
    %287 = vmatprep.subr.mxu0 0.0
    %288 = vmatpush2.msra.mxu0 0.0
    %289 = vmatprep.subr.mxu0 0.0
    %290 = vmatpush2.msra.mxu0 0.0
    %291 = vmatprep.subr.mxu0 0.0
    %292 = vmatpush2.msra.mxu0 0.0
    %293 = vmatprep.subr.mxu0 0.0
    %294 = vmatpush2.msra.mxu0 0.0
    %295 = vmatprep.mubr.f32.mxu0 0.0
    %296 = vmatmul.mubr.f32.gmra.mxu0 %v229
    %v297 = vpop.f32.mrf.mxu0
    %v298 = vadd.f32 %v227, %v297
    %v299 = vpop.f32.mrf.mxu0
    %300 = vdwg.mxu0
    %v301 = vmax.f32 %v298, 0.0
    %v302 = vld [vmem:[#allocation5 + $0x50] sm:$0xff]
    %v303 = vld [vmem:[#allocation5 + $0x58] sm:$0xff]
    %v304 = vld [vmem:[#allocation5 + $0x60] sm:$0xff]
    %v305 = vld [vmem:[#allocation5 + $0x68] sm:$0xff]
    %v306 = vld [vmem:[#allocation7 + $0x3] sm:$0x1]
    %v307 = vlaneseq
    %v308 = vshrl.u32 %v307, 7
    %v309 = vsub.s32 0, %v308
    %v310 = vrot.slane %v306, %v309
    %v312 = vsel %vm144, %v301, 0
    %314 = vmatprep.subr.mxu0 0.0
    %315 = vmatpush1.msra.mxu0 0.0
    %316 = vmatprep.subr.mxu0 0.0
    %317 = vmatpush1.msra.mxu0 0.0
    %318 = vmatprep.subr.mxu0 0.0
    %319 = vmatpush1.msra.mxu0 0.0
    %320 = vmatprep.subr.mxu0 0.0
    %321 = vmatpush1.msra.mxu0 0.0
    %322 = vmatprep.subr.mxu0 0.0
    %323 = vmatpush1.msra.mxu0 0.0
    %324 = vmatprep.subr.mxu0 0.0
    %325 = vmatpush1.msra.mxu0 0.0
    %326 = vmatprep.subr.mxu0 0.0
    %327 = vmatpush1.msra.mxu0 0.0
    %328 = vmatprep.subr.mxu0 0.0
    %329 = vmatpush1.msra.mxu0 0.0
    %330 = vmatprep.subr.mxu0 0.0
    %331 = vmatpush1.msra.mxu0 0.0
    %332 = vmatprep.subr.mxu0 0.0
    %333 = vmatpush1.msra.mxu0 0.0
    %334 = vmatprep.subr.mxu0 0.0
    %335 = vmatpush1.msra.mxu0 0.0
    %336 = vmatprep.subr.mxu0 0.0
    %337 = vmatpush1.msra.mxu0 0.0
    %338 = vmatprep.subr.mxu0 0.0
    %339 = vmatpush1.msra.mxu0 %v305
    %340 = vmatprep.subr.mxu0 0.0
    %341 = vmatpush1.msra.mxu0 %v304
    %342 = vmatprep.subr.mxu0 0.0
    %343 = vmatpush1.msra.mxu0 %v303
    %344 = vmatprep.subr.mxu0 0.0
    %345 = vmatpush1.msra.mxu0 %v302
    %346 = vmatprep.subr.mxu0 0.0
    %347 = vmatpush2.msra.mxu0 0.0
    %348 = vmatprep.subr.mxu0 0.0
    %349 = vmatpush2.msra.mxu0 0.0
    %350 = vmatprep.subr.mxu0 0.0
    %351 = vmatpush2.msra.mxu0 0.0
    %352 = vmatprep.subr.mxu0 0.0
    %353 = vmatpush2.msra.mxu0 0.0
    %354 = vmatprep.subr.mxu0 0.0
    %355 = vmatpush2.msra.mxu0 0.0
    %356 = vmatprep.subr.mxu0 0.0
    %357 = vmatpush2.msra.mxu0 0.0
    %358 = vmatprep.subr.mxu0 0.0
    %359 = vmatpush2.msra.mxu0 0.0
    %360 = vmatprep.subr.mxu0 0.0
    %361 = vmatpush2.msra.mxu0 0.0
    %362 = vmatprep.subr.mxu0 0.0
    %363 = vmatpush2.msra.mxu0 0.0
    %364 = vmatprep.subr.mxu0 0.0
    %365 = vmatpush2.msra.mxu0 0.0
    %366 = vmatprep.subr.mxu0 0.0
    %367 = vmatpush2.msra.mxu0 0.0
    %368 = vmatprep.subr.mxu0 0.0
    %369 = vmatpush2.msra.mxu0 0.0
    %370 = vmatprep.subr.mxu0 0.0
    %371 = vmatpush2.msra.mxu0 0.0
    %372 = vmatprep.subr.mxu0 0.0
    %373 = vmatpush2.msra.mxu0 0.0
    %374 = vmatprep.subr.mxu0 0.0
    %375 = vmatpush2.msra.mxu0 0.0
    %376 = vmatprep.subr.mxu0 0.0
    %377 = vmatpush2.msra.mxu0 0.0
    %378 = vmatprep.mubr.f32.mxu0 0.0
    %379 = vmatmul.mubr.f32.gmra.mxu0 %v312
    %v380 = vpop.f32.mrf.mxu0
    %v381 = vadd.f32 %v310, %v380
    %v382 = vpop.f32.mrf.mxu0
    %383 = vdwg.mxu0
    %v384 = vld [vmem:[#allocation5 + $0xd8] sm:$0xff]
    %vm385 = vcmask 64512
    %v387 = vsel %vm385, %v381, 0
    %v390 = vsel %vm385, %v384, 0
    %392 = vmatprep.subr.mxu0 0.0
    %393 = vmatpush1.msra.mxu0 0.0
    %394 = vmatprep.subr.mxu0 0.0
    %395 = vmatpush1.msra.mxu0 0.0
    %396 = vmatprep.subr.mxu0 0.0
    %397 = vmatpush1.msra.mxu0 0.0
    %398 = vmatprep.subr.mxu0 0.0
    %399 = vmatpush1.msra.mxu0 0.0
    %400 = vmatprep.subr.mxu0 0.0
    %401 = vmatpush1.msra.mxu0 0.0
    %402 = vmatprep.subr.mxu0 0.0
    %403 = vmatpush1.msra.mxu0 0.0
    %404 = vmatprep.subr.mxu0 0.0
    %405 = vmatpush1.msra.mxu0 0.0
    %406 = vmatprep.subr.mxu0 0.0
    %407 = vmatpush1.msra.mxu0 0.0
    %408 = vmatprep.subr.mxu0 0.0
    %409 = vmatpush1.msra.mxu0 0.0
    %410 = vmatprep.subr.mxu0 0.0
    %411 = vmatpush1.msra.mxu0 0.0
    %412 = vmatprep.subr.mxu0 0.0
    %413 = vmatpush1.msra.mxu0 0.0
    %414 = vmatprep.subr.mxu0 0.0
    %415 = vmatpush1.msra.mxu0 0.0
    %416 = vmatprep.subr.mxu0 0.0
    %417 = vmatpush1.msra.mxu0 0.0
    %418 = vmatprep.subr.mxu0 0.0
    %419 = vmatpush1.msra.mxu0 0.0
    %420 = vmatprep.subr.mxu0 0.0
    %421 = vmatpush1.msra.mxu0 0.0
    %422 = vmatprep.subr.mxu0 0.0
    %423 = vmatpush1.msra.mxu0 %v384
    %424 = vmatprep.subr.mxu0 0.0
    %425 = vmatpush2.msra.mxu0 0.0
    %426 = vmatprep.subr.mxu0 0.0
    %427 = vmatpush2.msra.mxu0 0.0
    %428 = vmatprep.subr.mxu0 0.0
    %429 = vmatpush2.msra.mxu0 0.0
    %430 = vmatprep.subr.mxu0 0.0
    %431 = vmatpush2.msra.mxu0 0.0
    %432 = vmatprep.subr.mxu0 0.0
    %433 = vmatpush2.msra.mxu0 0.0
    %434 = vmatprep.subr.mxu0 0.0
    %435 = vmatpush2.msra.mxu0 0.0
    %436 = vmatprep.subr.mxu0 0.0
    %437 = vmatpush2.msra.mxu0 0.0
    %438 = vmatprep.subr.mxu0 0.0
    %439 = vmatpush2.msra.mxu0 0.0
    %440 = vmatprep.subr.mxu0 0.0
    %441 = vmatpush2.msra.mxu0 0.0
    %442 = vmatprep.subr.mxu0 0.0
    %443 = vmatpush2.msra.mxu0 0.0
    %444 = vmatprep.subr.mxu0 0.0
    %445 = vmatpush2.msra.mxu0 0.0
    %446 = vmatprep.subr.mxu0 0.0
    %447 = vmatpush2.msra.mxu0 0.0
    %448 = vmatprep.subr.mxu0 0.0
    %449 = vmatpush2.msra.mxu0 0.0
    %450 = vmatprep.subr.mxu0 0.0
    %451 = vmatpush2.msra.mxu0 0.0
    %452 = vmatprep.subr.mxu0 0.0
    %453 = vmatpush2.msra.mxu0 0.0
    %454 = vmatprep.subr.mxu0 0.0
    %455 = vmatpush2.msra.mxu0 0.0
    %456 = vmatprep.mubr.f32.mxu0 0.0
    %457 = vmatmul.mubr.f32.gmra.mxu0 %v387
    %v458 = vpop.f32.mrf.mxu0
    %v459 = vadd.f32 0.0, %v458
    %v460 = vpop.f32.mrf.mxu0
    %461 = vmatprep.mubr.f32.mxu0 0.0
    %462 = vmatmul.mubr.f32.gmra.mxu0 %v390
    %v463 = vpop.f32.mrf.mxu0
    %v464 = vadd.f32 0.0, %v463
    %v465 = vpop.f32.mrf.mxu0
    %466 = vdwg.mxu0
    %v468 = vsel %vm385, %v459, 0
    %v471 = vsel %vm385, %v464, 0
    %473 = vmatprep.subr.mxu0 0.0
    %474 = vmatpush1.msra.mxu0 0.0
    %475 = vmatprep.subr.mxu0 0.0
    %476 = vmatpush1.msra.mxu0 0.0
    %477 = vmatprep.subr.mxu0 0.0
    %478 = vmatpush1.msra.mxu0 0.0
    %479 = vmatprep.subr.mxu0 0.0
    %480 = vmatpush1.msra.mxu0 0.0
    %481 = vmatprep.subr.mxu0 0.0
    %482 = vmatpush1.msra.mxu0 0.0
    %483 = vmatprep.subr.mxu0 0.0
    %484 = vmatpush1.msra.mxu0 0.0
    %485 = vmatprep.subr.mxu0 0.0
    %486 = vmatpush1.msra.mxu0 0.0
    %487 = vmatprep.subr.mxu0 0.0
    %488 = vmatpush1.msra.mxu0 0.0
    %489 = vmatprep.subr.mxu0 0.0
    %490 = vmatpush1.msra.mxu0 0.0
    %491 = vmatprep.subr.mxu0 0.0
    %492 = vmatpush1.msra.mxu0 0.0
    %493 = vmatprep.subr.mxu0 0.0
    %494 = vmatpush1.msra.mxu0 0.0
    %495 = vmatprep.subr.mxu0 0.0
    %496 = vmatpush1.msra.mxu0 0.0
    %497 = vmatprep.subr.mxu0 0.0
    %498 = vmatpush1.msra.mxu0 0.0
    %499 = vmatprep.subr.mxu0 0.0
    %500 = vmatpush1.msra.mxu0 0.0
    %501 = vmatprep.subr.mxu0 0.0
    %502 = vmatpush1.msra.mxu0 0.0
    %503 = vmatprep.subr.mxu0 0.0
    %504 = vmatpush1.msra.mxu0 %v464
    %505 = vmatprep.subr.mxu0 0.0
    %506 = vmatpush2.msra.mxu0 0.0
    %507 = vmatprep.subr.mxu0 0.0
    %508 = vmatpush2.msra.mxu0 0.0
    %509 = vmatprep.subr.mxu0 0.0
    %510 = vmatpush2.msra.mxu0 0.0
    %511 = vmatprep.subr.mxu0 0.0
    %512 = vmatpush2.msra.mxu0 0.0
    %513 = vmatprep.subr.mxu0 0.0
    %514 = vmatpush2.msra.mxu0 0.0
    %515 = vmatprep.subr.mxu0 0.0
    %516 = vmatpush2.msra.mxu0 0.0
    %517 = vmatprep.subr.mxu0 0.0
    %518 = vmatpush2.msra.mxu0 0.0
    %519 = vmatprep.subr.mxu0 0.0
    %520 = vmatpush2.msra.mxu0 0.0
    %521 = vmatprep.subr.mxu0 0.0
    %522 = vmatpush2.msra.mxu0 0.0
    %523 = vmatprep.subr.mxu0 0.0
    %524 = vmatpush2.msra.mxu0 0.0
    %525 = vmatprep.subr.mxu0 0.0
    %526 = vmatpush2.msra.mxu0 0.0
    %527 = vmatprep.subr.mxu0 0.0
    %528 = vmatpush2.msra.mxu0 0.0
    %529 = vmatprep.subr.mxu0 0.0
    %530 = vmatpush2.msra.mxu0 0.0
    %531 = vmatprep.subr.mxu0 0.0
    %532 = vmatpush2.msra.mxu0 0.0
    %533 = vmatprep.subr.mxu0 0.0
    %534 = vmatpush2.msra.mxu0 0.0
    %535 = vmatprep.subr.mxu0 0.0
    %536 = vmatpush2.msra.mxu0 0.0
    %537 = vmatprep.mubr.f32.mxu0 0.0
    %538 = vmatmul.mubr.f32.gmra.mxu0 %v387
    %v539 = vpop.f32.mrf.mxu0
    %v540 = vadd.f32 0.0, %v539
    %v541 = vpop.f32.mrf.mxu0
    %542 = vmatprep.mubr.f32.mxu0 0.0
    %543 = vmatmul.mubr.f32.gmra.mxu0 %v468
    %v544 = vpop.f32.mrf.mxu0
    %v545 = vadd.f32 0.0, %v544
    %v546 = vpop.f32.mrf.mxu0
    %547 = vmatprep.mubr.f32.mxu0 0.0
    %548 = vmatmul.mubr.f32.gmra.mxu0 %v471
    %v549 = vpop.f32.mrf.mxu0
    %v550 = vadd.f32 0.0, %v549
    %v551 = vpop.f32.mrf.mxu0
    %552 = vdwg.mxu0
    %v554 = vsel %vm385, %v540, 0
    %v557 = vsel %vm385, %v545, 0
    %v560 = vsel %vm385, %v550, 0
    %562 = vmatprep.subr.mxu0 0.0
    %563 = vmatpush1.msra.mxu0 0.0
    %564 = vmatprep.subr.mxu0 0.0
    %565 = vmatpush1.msra.mxu0 0.0
    %566 = vmatprep.subr.mxu0 0.0
    %567 = vmatpush1.msra.mxu0 0.0
    %568 = vmatprep.subr.mxu0 0.0
    %569 = vmatpush1.msra.mxu0 0.0
    %570 = vmatprep.subr.mxu0 0.0
    %571 = vmatpush1.msra.mxu0 0.0
    %572 = vmatprep.subr.mxu0 0.0
    %573 = vmatpush1.msra.mxu0 0.0
    %574 = vmatprep.subr.mxu0 0.0
    %575 = vmatpush1.msra.mxu0 0.0
    %576 = vmatprep.subr.mxu0 0.0
    %577 = vmatpush1.msra.mxu0 0.0
    %578 = vmatprep.subr.mxu0 0.0
    %579 = vmatpush1.msra.mxu0 0.0
    %580 = vmatprep.subr.mxu0 0.0
    %581 = vmatpush1.msra.mxu0 0.0
    %582 = vmatprep.subr.mxu0 0.0
    %583 = vmatpush1.msra.mxu0 0.0
    %584 = vmatprep.subr.mxu0 0.0
    %585 = vmatpush1.msra.mxu0 0.0
    %586 = vmatprep.subr.mxu0 0.0
    %587 = vmatpush1.msra.mxu0 0.0
    %588 = vmatprep.subr.mxu0 0.0
    %589 = vmatpush1.msra.mxu0 0.0
    %590 = vmatprep.subr.mxu0 0.0
    %591 = vmatpush1.msra.mxu0 0.0
    %592 = vmatprep.subr.mxu0 0.0
    %593 = vmatpush1.msra.mxu0 %v550
    %594 = vmatprep.subr.mxu0 0.0
    %595 = vmatpush2.msra.mxu0 0.0
    %596 = vmatprep.subr.mxu0 0.0
    %597 = vmatpush2.msra.mxu0 0.0
    %598 = vmatprep.subr.mxu0 0.0
    %599 = vmatpush2.msra.mxu0 0.0
    %600 = vmatprep.subr.mxu0 0.0
    %601 = vmatpush2.msra.mxu0 0.0
    %602 = vmatprep.subr.mxu0 0.0
    %603 = vmatpush2.msra.mxu0 0.0
    %604 = vmatprep.subr.mxu0 0.0
    %605 = vmatpush2.msra.mxu0 0.0
    %606 = vmatprep.subr.mxu0 0.0
    %607 = vmatpush2.msra.mxu0 0.0
    %608 = vmatprep.subr.mxu0 0.0
    %609 = vmatpush2.msra.mxu0 0.0
    %610 = vmatprep.subr.mxu0 0.0
    %611 = vmatpush2.msra.mxu0 0.0
    %612 = vmatprep.subr.mxu0 0.0
    %613 = vmatpush2.msra.mxu0 0.0
    %614 = vmatprep.subr.mxu0 0.0
    %615 = vmatpush2.msra.mxu0 0.0
    %616 = vmatprep.subr.mxu0 0.0
    %617 = vmatpush2.msra.mxu0 0.0
    %618 = vmatprep.subr.mxu0 0.0
    %619 = vmatpush2.msra.mxu0 0.0
    %620 = vmatprep.subr.mxu0 0.0
    %621 = vmatpush2.msra.mxu0 0.0
    %622 = vmatprep.subr.mxu0 0.0
    %623 = vmatpush2.msra.mxu0 0.0
    %624 = vmatprep.subr.mxu0 0.0
    %625 = vmatpush2.msra.mxu0 0.0
    %626 = vmatprep.mubr.f32.mxu0 0.0
    %627 = vmatmul.mubr.f32.gmra.mxu0 %v387
    %v628 = vpop.f32.mrf.mxu0
    %v629 = vadd.f32 0.0, %v628
    %v630 = vpop.f32.mrf.mxu0
    %631 = vmatprep.mubr.f32.mxu0 0.0
    %632 = vmatmul.mubr.f32.gmra.mxu0 %v468
    %v633 = vpop.f32.mrf.mxu0
    %v634 = vadd.f32 0.0, %v633
    %v635 = vpop.f32.mrf.mxu0
    %636 = vmatprep.mubr.f32.mxu0 0.0
    %637 = vmatmul.mubr.f32.gmra.mxu0 %v554
    %v638 = vpop.f32.mrf.mxu0
    %v639 = vadd.f32 0.0, %v638
    %v640 = vpop.f32.mrf.mxu0
    %641 = vmatprep.mubr.f32.mxu0 0.0
    %642 = vmatmul.mubr.f32.gmra.mxu0 %v557
    %v643 = vpop.f32.mrf.mxu0
    %v644 = vadd.f32 0.0, %v643
    %v645 = vpop.f32.mrf.mxu0
    %646 = vmatprep.mubr.f32.mxu0 0.0
    %647 = vmatmul.mubr.f32.gmra.mxu0 %v560
    %v648 = vpop.f32.mrf.mxu0
    %v649 = vadd.f32 0.0, %v648
    %v650 = vpop.f32.mrf.mxu0
    %651 = vdwg.mxu0
    %v653 = vsel %vm385, %v629, 0
    %v656 = vsel %vm385, %v634, 0
    %v659 = vsel %vm385, %v639, 0
    %v662 = vsel %vm385, %v644, 0
    %v665 = vsel %vm385, %v649, 0
    %667 = vmatprep.subr.mxu0 0.0
    %668 = vmatpush1.msra.mxu0 0.0
    %669 = vmatprep.subr.mxu0 0.0
    %670 = vmatpush1.msra.mxu0 0.0
    %671 = vmatprep.subr.mxu0 0.0
    %672 = vmatpush1.msra.mxu0 0.0
    %673 = vmatprep.subr.mxu0 0.0
    %674 = vmatpush1.msra.mxu0 0.0
    %675 = vmatprep.subr.mxu0 0.0
    %676 = vmatpush1.msra.mxu0 0.0
    %677 = vmatprep.subr.mxu0 0.0
    %678 = vmatpush1.msra.mxu0 0.0
    %679 = vmatprep.subr.mxu0 0.0
    %680 = vmatpush1.msra.mxu0 0.0
    %681 = vmatprep.subr.mxu0 0.0
    %682 = vmatpush1.msra.mxu0 0.0
    %683 = vmatprep.subr.mxu0 0.0
    %684 = vmatpush1.msra.mxu0 0.0
    %685 = vmatprep.subr.mxu0 0.0
    %686 = vmatpush1.msra.mxu0 0.0
    %687 = vmatprep.subr.mxu0 0.0
    %688 = vmatpush1.msra.mxu0 0.0
    %689 = vmatprep.subr.mxu0 0.0
    %690 = vmatpush1.msra.mxu0 0.0
    %691 = vmatprep.subr.mxu0 0.0
    %692 = vmatpush1.msra.mxu0 0.0
    %693 = vmatprep.subr.mxu0 0.0
    %694 = vmatpush1.msra.mxu0 0.0
    %695 = vmatprep.subr.mxu0 0.0
    %696 = vmatpush1.msra.mxu0 0.0
    %697 = vmatprep.subr.mxu0 0.0
    %698 = vmatpush1.msra.mxu0 %v649
    %699 = vmatprep.subr.mxu0 0.0
    %700 = vmatpush2.msra.mxu0 0.0
    %701 = vmatprep.subr.mxu0 0.0
    %702 = vmatpush2.msra.mxu0 0.0
    %703 = vmatprep.subr.mxu0 0.0
    %704 = vmatpush2.msra.mxu0 0.0
    %705 = vmatprep.subr.mxu0 0.0
    %706 = vmatpush2.msra.mxu0 0.0
    %707 = vmatprep.subr.mxu0 0.0
    %708 = vmatpush2.msra.mxu0 0.0
    %709 = vmatprep.subr.mxu0 0.0
    %710 = vmatpush2.msra.mxu0 0.0
    %711 = vmatprep.subr.mxu0 0.0
    %712 = vmatpush2.msra.mxu0 0.0
    %713 = vmatprep.subr.mxu0 0.0
    %714 = vmatpush2.msra.mxu0 0.0
    %715 = vmatprep.subr.mxu0 0.0
    %716 = vmatpush2.msra.mxu0 0.0
    %717 = vmatprep.subr.mxu0 0.0
    %718 = vmatpush2.msra.mxu0 0.0
    %719 = vmatprep.subr.mxu0 0.0
    %720 = vmatpush2.msra.mxu0 0.0
    %721 = vmatprep.subr.mxu0 0.0
    %722 = vmatpush2.msra.mxu0 0.0
    %723 = vmatprep.subr.mxu0 0.0
    %724 = vmatpush2.msra.mxu0 0.0
    %725 = vmatprep.subr.mxu0 0.0
    %726 = vmatpush2.msra.mxu0 0.0
    %727 = vmatprep.subr.mxu0 0.0
    %728 = vmatpush2.msra.mxu0 0.0
    %729 = vmatprep.subr.mxu0 0.0
    %730 = vmatpush2.msra.mxu0 0.0
    %731 = vmatprep.mubr.f32.mxu0 0.0
    %732 = vmatmul.mubr.f32.gmra.mxu0 %v387
    %v733 = vpop.f32.mrf.mxu0
    %v734 = vadd.f32 0.0, %v733
    %v735 = vpop.f32.mrf.mxu0
    %736 = vmatprep.mubr.f32.mxu0 0.0
    %737 = vmatmul.mubr.f32.gmra.mxu0 %v468
    %v738 = vpop.f32.mrf.mxu0
    %v739 = vadd.f32 0.0, %v738
    %v740 = vpop.f32.mrf.mxu0
    %741 = vmatprep.mubr.f32.mxu0 0.0
    %742 = vmatmul.mubr.f32.gmra.mxu0 %v554
    %v743 = vpop.f32.mrf.mxu0
    %v744 = vadd.f32 0.0, %v743
    %v745 = vpop.f32.mrf.mxu0
    %746 = vmatprep.mubr.f32.mxu0 0.0
    %747 = vmatmul.mubr.f32.gmra.mxu0 %v557
    %v748 = vpop.f32.mrf.mxu0
    %v749 = vadd.f32 0.0, %v748
    %v750 = vpop.f32.mrf.mxu0
    %751 = vmatprep.mubr.f32.mxu0 0.0
    %752 = vmatmul.mubr.f32.gmra.mxu0 %v653
    %v753 = vpop.f32.mrf.mxu0
    %v754 = vadd.f32 0.0, %v753
    %v755 = vpop.f32.mrf.mxu0
    %756 = vmatprep.mubr.f32.mxu0 0.0
    %757 = vmatmul.mubr.f32.gmra.mxu0 %v656
    %v758 = vpop.f32.mrf.mxu0
    %v759 = vadd.f32 0.0, %v758
    %v760 = vpop.f32.mrf.mxu0
    %761 = vmatprep.mubr.f32.mxu0 0.0
    %762 = vmatmul.mubr.f32.gmra.mxu0 %v659
    %v763 = vpop.f32.mrf.mxu0
    %v764 = vadd.f32 0.0, %v763
    %v765 = vpop.f32.mrf.mxu0
    %766 = vmatprep.mubr.f32.mxu0 0.0
    %767 = vmatmul.mubr.f32.gmra.mxu0 %v662
    %v768 = vpop.f32.mrf.mxu0
    %v769 = vadd.f32 0.0, %v768
    %v770 = vpop.f32.mrf.mxu0
    %771 = vmatprep.mubr.f32.mxu0 0.0
    %772 = vmatmul.mubr.f32.gmra.mxu0 %v665
    %v773 = vpop.f32.mrf.mxu0
    %v774 = vadd.f32 0.0, %v773
    %v775 = vpop.f32.mrf.mxu0
    %776 = vdwg.mxu0
    %v778 = vsel %vm385, %v734, 0
    %v781 = vsel %vm385, %v739, 0
    %v784 = vsel %vm385, %v744, 0
    %v787 = vsel %vm385, %v749, 0
    %v790 = vsel %vm385, %v754, 0
    %v793 = vsel %vm385, %v759, 0
    %v796 = vsel %vm385, %v764, 0
    %v799 = vsel %vm385, %v769, 0
    %v802 = vsel %vm385, %v774, 0
    %804 = vmatprep.subr.mxu0 0.0
    %805 = vmatpush1.msra.mxu0 0.0
    %806 = vmatprep.subr.mxu0 0.0
    %807 = vmatpush1.msra.mxu0 0.0
    %808 = vmatprep.subr.mxu0 0.0
    %809 = vmatpush1.msra.mxu0 0.0
    %810 = vmatprep.subr.mxu0 0.0
    %811 = vmatpush1.msra.mxu0 0.0
    %812 = vmatprep.subr.mxu0 0.0
    %813 = vmatpush1.msra.mxu0 0.0
    %814 = vmatprep.subr.mxu0 0.0
    %815 = vmatpush1.msra.mxu0 0.0
    %816 = vmatprep.subr.mxu0 0.0
    %817 = vmatpush1.msra.mxu0 0.0
    %818 = vmatprep.subr.mxu0 0.0
    %819 = vmatpush1.msra.mxu0 0.0
    %820 = vmatprep.subr.mxu0 0.0
    %821 = vmatpush1.msra.mxu0 0.0
    %822 = vmatprep.subr.mxu0 0.0
    %823 = vmatpush1.msra.mxu0 0.0
    %824 = vmatprep.subr.mxu0 0.0
    %825 = vmatpush1.msra.mxu0 0.0
    %826 = vmatprep.subr.mxu0 0.0
    %827 = vmatpush1.msra.mxu0 0.0
    %828 = vmatprep.subr.mxu0 0.0
    %829 = vmatpush1.msra.mxu0 0.0
    %830 = vmatprep.subr.mxu0 0.0
    %831 = vmatpush1.msra.mxu0 0.0
    %832 = vmatprep.subr.mxu0 0.0
    %833 = vmatpush1.msra.mxu0 0.0
    %834 = vmatprep.subr.mxu0 0.0
    %835 = vmatpush1.msra.mxu0 %v774
    %836 = vmatprep.subr.mxu0 0.0
    %837 = vmatpush2.msra.mxu0 0.0
    %838 = vmatprep.subr.mxu0 0.0
    %839 = vmatpush2.msra.mxu0 0.0
    %840 = vmatprep.subr.mxu0 0.0
    %841 = vmatpush2.msra.mxu0 0.0
    %842 = vmatprep.subr.mxu0 0.0
    %843 = vmatpush2.msra.mxu0 0.0
    %844 = vmatprep.subr.mxu0 0.0
    %845 = vmatpush2.msra.mxu0 0.0
    %846 = vmatprep.subr.mxu0 0.0
    %847 = vmatpush2.msra.mxu0 0.0
    %848 = vmatprep.subr.mxu0 0.0
    %849 = vmatpush2.msra.mxu0 0.0
    %850 = vmatprep.subr.mxu0 0.0
    %851 = vmatpush2.msra.mxu0 0.0
    %852 = vmatprep.subr.mxu0 0.0
    %853 = vmatpush2.msra.mxu0 0.0
    %854 = vmatprep.subr.mxu0 0.0
    %855 = vmatpush2.msra.mxu0 0.0
    %856 = vmatprep.subr.mxu0 0.0
    %857 = vmatpush2.msra.mxu0 0.0
    %858 = vmatprep.subr.mxu0 0.0
    %859 = vmatpush2.msra.mxu0 0.0
    %860 = vmatprep.subr.mxu0 0.0
    %861 = vmatpush2.msra.mxu0 0.0
    %862 = vmatprep.subr.mxu0 0.0
    %863 = vmatpush2.msra.mxu0 0.0
    %864 = vmatprep.subr.mxu0 0.0
    %865 = vmatpush2.msra.mxu0 0.0
    %866 = vmatprep.subr.mxu0 0.0
    %867 = vmatpush2.msra.mxu0 0.0
    %868 = vmatprep.mubr.f32.mxu0 0.0
    %869 = vmatmul.mubr.f32.gmra.mxu0 %v387
    %v870 = vpop.f32.mrf.mxu0
    %v871 = vadd.f32 0.0, %v870
    %v872 = vpop.f32.mrf.mxu0
    %873 = vmatprep.mubr.f32.mxu0 0.0
    %874 = vmatmul.mubr.f32.gmra.mxu0 %v468
    %v875 = vpop.f32.mrf.mxu0
    %v876 = vadd.f32 0.0, %v875
    %v877 = vpop.f32.mrf.mxu0
    %878 = vmatprep.mubr.f32.mxu0 0.0
    %879 = vmatmul.mubr.f32.gmra.mxu0 %v554
    %v880 = vpop.f32.mrf.mxu0
    %v881 = vadd.f32 0.0, %v880
    %v882 = vpop.f32.mrf.mxu0
    %883 = vmatprep.mubr.f32.mxu0 0.0
    %884 = vmatmul.mubr.f32.gmra.mxu0 %v557
    %v885 = vpop.f32.mrf.mxu0
    %v886 = vadd.f32 0.0, %v885
    %v887 = vpop.f32.mrf.mxu0
    %888 = vmatprep.mubr.f32.mxu0 0.0
    %889 = vmatmul.mubr.f32.gmra.mxu0 %v653
    %v890 = vpop.f32.mrf.mxu0
    %v891 = vadd.f32 0.0, %v890
    %v892 = vpop.f32.mrf.mxu0
    %893 = vmatprep.mubr.f32.mxu0 0.0
    %894 = vmatmul.mubr.f32.gmra.mxu0 %v656
    %v895 = vpop.f32.mrf.mxu0
    %v896 = vadd.f32 0.0, %v895
    %v897 = vpop.f32.mrf.mxu0
    %898 = vmatprep.mubr.f32.mxu0 0.0
    %899 = vmatmul.mubr.f32.gmra.mxu0 %v659
    %v900 = vpop.f32.mrf.mxu0
    %v901 = vadd.f32 0.0, %v900
    %v902 = vpop.f32.mrf.mxu0
    %903 = vmatprep.mubr.f32.mxu0 0.0
    %904 = vmatmul.mubr.f32.gmra.mxu0 %v662
    %v905 = vpop.f32.mrf.mxu0
    %v906 = vadd.f32 0.0, %v905
    %v907 = vpop.f32.mrf.mxu0
    %908 = vmatprep.mubr.f32.mxu0 0.0
    %909 = vmatmul.mubr.f32.gmra.mxu0 %v778
    %v910 = vpop.f32.mrf.mxu0
    %v911 = vadd.f32 0.0, %v910
    %v912 = vpop.f32.mrf.mxu0
    %913 = vmatprep.mubr.f32.mxu0 0.0
    %914 = vmatmul.mubr.f32.gmra.mxu0 %v781
    %v915 = vpop.f32.mrf.mxu0
    %v916 = vadd.f32 0.0, %v915
    %v917 = vpop.f32.mrf.mxu0
    %918 = vmatprep.mubr.f32.mxu0 0.0
    %919 = vmatmul.mubr.f32.gmra.mxu0 %v784
    %v920 = vpop.f32.mrf.mxu0
    %v921 = vadd.f32 0.0, %v920
    %v922 = vpop.f32.mrf.mxu0
    %923 = vmatprep.mubr.f32.mxu0 0.0
    %924 = vmatmul.mubr.f32.gmra.mxu0 %v787
    %v925 = vpop.f32.mrf.mxu0
    %v926 = vadd.f32 0.0, %v925
    %v927 = vpop.f32.mrf.mxu0
    %928 = vmatprep.mubr.f32.mxu0 0.0
    %929 = vmatmul.mubr.f32.gmra.mxu0 %v790
    %v930 = vpop.f32.mrf.mxu0
    %v931 = vadd.f32 0.0, %v930
    %v932 = vpop.f32.mrf.mxu0
    %933 = vmatprep.mubr.f32.mxu0 0.0
    %934 = vmatmul.mubr.f32.gmra.mxu0 %v793
    %v935 = vpop.f32.mrf.mxu0
    %v936 = vadd.f32 0.0, %v935
    %v937 = vpop.f32.mrf.mxu0
    %938 = vmatprep.mubr.f32.mxu0 0.0
    %939 = vmatmul.mubr.f32.gmra.mxu0 %v796
    %v940 = vpop.f32.mrf.mxu0
    %v941 = vadd.f32 0.0, %v940
    %v942 = vpop.f32.mrf.mxu0
    %943 = vmatprep.mubr.f32.mxu0 0.0
    %944 = vmatmul.mubr.f32.gmra.mxu0 %v799
    %v945 = vpop.f32.mrf.mxu0
    %v946 = vadd.f32 0.0, %v945
    %v947 = vpop.f32.mrf.mxu0
    %948 = vmatprep.mubr.f32.mxu0 0.0
    %949 = vmatmul.mubr.f32.gmra.mxu0 %v802
    %v950 = vpop.f32.mrf.mxu0
    %v951 = vadd.f32 0.0, %v950
    %v952 = vpop.f32.mrf.mxu0
    %953 = vdwg.mxu0
    %v955 = vsel %vm385, %v871, 0
    %v958 = vsel %vm385, %v876, 0
    %v961 = vsel %vm385, %v951, 0
    %963 = vmatprep.subr.mxu0 0.0
    %964 = vmatpush1.msra.mxu0 0.0
    %965 = vmatprep.subr.mxu0 0.0
    %966 = vmatpush1.msra.mxu0 0.0
    %967 = vmatprep.subr.mxu0 0.0
    %968 = vmatpush1.msra.mxu0 0.0
    %969 = vmatprep.subr.mxu0 0.0
    %970 = vmatpush1.msra.mxu0 0.0
    %971 = vmatprep.subr.mxu0 0.0
    %972 = vmatpush1.msra.mxu0 0.0
    %973 = vmatprep.subr.mxu0 0.0
    %974 = vmatpush1.msra.mxu0 0.0
    %975 = vmatprep.subr.mxu0 0.0
    %976 = vmatpush1.msra.mxu0 0.0
    %977 = vmatprep.subr.mxu0 0.0
    %978 = vmatpush1.msra.mxu0 0.0
    %979 = vmatprep.subr.mxu0 0.0
    %980 = vmatpush1.msra.mxu0 0.0
    %981 = vmatprep.subr.mxu0 0.0
    %982 = vmatpush1.msra.mxu0 0.0
    %983 = vmatprep.subr.mxu0 0.0
    %984 = vmatpush1.msra.mxu0 0.0
    %985 = vmatprep.subr.mxu0 0.0
    %986 = vmatpush1.msra.mxu0 0.0
    %987 = vmatprep.subr.mxu0 0.0
    %988 = vmatpush1.msra.mxu0 0.0
    %989 = vmatprep.subr.mxu0 0.0
    %990 = vmatpush1.msra.mxu0 0.0
    %991 = vmatprep.subr.mxu0 0.0
    %992 = vmatpush1.msra.mxu0 0.0
    %993 = vmatprep.subr.mxu0 0.0
    %994 = vmatpush1.msra.mxu0 %v951
    %995 = vmatprep.subr.mxu0 0.0
    %996 = vmatpush2.msra.mxu0 0.0
    %997 = vmatprep.subr.mxu0 0.0
    %998 = vmatpush2.msra.mxu0 0.0
    %999 = vmatprep.subr.mxu0 0.0
    %1000 = vmatpush2.msra.mxu0 0.0
    %1001 = vmatprep.subr.mxu0 0.0
    %1002 = vmatpush2.msra.mxu0 0.0
    %1003 = vmatprep.subr.mxu0 0.0
    %1004 = vmatpush2.msra.mxu0 0.0
    %1005 = vmatprep.subr.mxu0 0.0
    %1006 = vmatpush2.msra.mxu0 0.0
    %1007 = vmatprep.subr.mxu0 0.0
    %1008 = vmatpush2.msra.mxu0 0.0
    %1009 = vmatprep.subr.mxu0 0.0
    %1010 = vmatpush2.msra.mxu0 0.0
    %1011 = vmatprep.subr.mxu0 0.0
    %1012 = vmatpush2.msra.mxu0 0.0
    %1013 = vmatprep.subr.mxu0 0.0
    %1014 = vmatpush2.msra.mxu0 0.0
    %1015 = vmatprep.subr.mxu0 0.0
    %1016 = vmatpush2.msra.mxu0 0.0
    %1017 = vmatprep.subr.mxu0 0.0
    %1018 = vmatpush2.msra.mxu0 0.0
    %1019 = vmatprep.subr.mxu0 0.0
    %1020 = vmatpush2.msra.mxu0 0.0
    %1021 = vmatprep.subr.mxu0 0.0
    %1022 = vmatpush2.msra.mxu0 0.0
    %1023 = vmatprep.subr.mxu0 0.0
    %1024 = vmatpush2.msra.mxu0 0.0
    %1025 = vmatprep.subr.mxu0 0.0
    %1026 = vmatpush2.msra.mxu0 0.0
    %1027 = vmatprep.mubr.f32.mxu0 0.0
    %1028 = vmatmul.mubr.f32.gmra.mxu0 %v387
    %v1029 = vpop.f32.mrf.mxu0
    %v1030 = vadd.f32 0.0, %v1029
    %v1031 = vpop.f32.mrf.mxu0
    %1032 = vmatprep.mubr.f32.mxu0 0.0
    %1033 = vmatmul.mubr.f32.gmra.mxu0 %v468
    %v1034 = vpop.f32.mrf.mxu0
    %v1035 = vadd.f32 0.0, %v1034
    %v1036 = vpop.f32.mrf.mxu0
    %1037 = vmatprep.mubr.f32.mxu0 0.0
    %1038 = vmatmul.mubr.f32.gmra.mxu0 %v554
    %v1039 = vpop.f32.mrf.mxu0
    %v1040 = vadd.f32 0.0, %v1039
    %v1041 = vpop.f32.mrf.mxu0
    %1042 = vmatprep.mubr.f32.mxu0 0.0
    %1043 = vmatmul.mubr.f32.gmra.mxu0 %v557
    %v1044 = vpop.f32.mrf.mxu0
    %v1045 = vadd.f32 0.0, %v1044
    %v1046 = vpop.f32.mrf.mxu0
    %1047 = vmatprep.mubr.f32.mxu0 0.0
    %1048 = vmatmul.mubr.f32.gmra.mxu0 %v653
    %v1049 = vpop.f32.mrf.mxu0
    %v1050 = vadd.f32 0.0, %v1049
    %v1051 = vpop.f32.mrf.mxu0
    %1052 = vmatprep.mubr.f32.mxu0 0.0
    %1053 = vmatmul.mubr.f32.gmra.mxu0 %v656
    %v1054 = vpop.f32.mrf.mxu0
    %v1055 = vadd.f32 0.0, %v1054
    %v1056 = vpop.f32.mrf.mxu0
    %1057 = vmatprep.mubr.f32.mxu0 0.0
    %1058 = vmatmul.mubr.f32.gmra.mxu0 %v659
    %v1059 = vpop.f32.mrf.mxu0
    %v1060 = vadd.f32 0.0, %v1059
    %v1061 = vpop.f32.mrf.mxu0
    %1062 = vmatprep.mubr.f32.mxu0 0.0
    %1063 = vmatmul.mubr.f32.gmra.mxu0 %v662
    %v1064 = vpop.f32.mrf.mxu0
    %v1065 = vadd.f32 0.0, %v1064
    %v1066 = vpop.f32.mrf.mxu0
    %1067 = vmatprep.mubr.f32.mxu0 0.0
    %1068 = vmatmul.mubr.f32.gmra.mxu0 %v778
    %v1069 = vpop.f32.mrf.mxu0
    %v1070 = vadd.f32 0.0, %v1069
    %v1071 = vpop.f32.mrf.mxu0
    %1072 = vmatprep.mubr.f32.mxu0 0.0
    %1073 = vmatmul.mubr.f32.gmra.mxu0 %v781
    %v1074 = vpop.f32.mrf.mxu0
    %v1075 = vadd.f32 0.0, %v1074
    %v1076 = vpop.f32.mrf.mxu0
    %1077 = vmatprep.mubr.f32.mxu0 0.0
    %1078 = vmatmul.mubr.f32.gmra.mxu0 %v784
    %v1079 = vpop.f32.mrf.mxu0
    %v1080 = vadd.f32 0.0, %v1079
    %v1081 = vpop.f32.mrf.mxu0
    %1082 = vmatprep.mubr.f32.mxu0 0.0
    %1083 = vmatmul.mubr.f32.gmra.mxu0 %v787
    %v1084 = vpop.f32.mrf.mxu0
    %v1085 = vadd.f32 0.0, %v1084
    %v1086 = vpop.f32.mrf.mxu0
    %1087 = vmatprep.mubr.f32.mxu0 0.0
    %1088 = vmatmul.mubr.f32.gmra.mxu0 %v790
    %v1089 = vpop.f32.mrf.mxu0
    %v1090 = vadd.f32 0.0, %v1089
    %v1091 = vpop.f32.mrf.mxu0
    %1092 = vmatprep.mubr.f32.mxu0 0.0
    %1093 = vmatmul.mubr.f32.gmra.mxu0 %v793
    %v1094 = vpop.f32.mrf.mxu0
    %v1095 = vadd.f32 0.0, %v1094
    %v1096 = vpop.f32.mrf.mxu0
    %1097 = vmatprep.mubr.f32.mxu0 0.0
    %1098 = vmatmul.mubr.f32.gmra.mxu0 %v796
    %v1099 = vpop.f32.mrf.mxu0
    %v1100 = vadd.f32 0.0, %v1099
    %v1101 = vpop.f32.mrf.mxu0
    %1102 = vmatprep.mubr.f32.mxu0 0.0
    %1103 = vmatmul.mubr.f32.gmra.mxu0 %v799
    %v1104 = vpop.f32.mrf.mxu0
    %v1105 = vadd.f32 0.0, %v1104
    %v1106 = vpop.f32.mrf.mxu0
    %1107 = vmatprep.mubr.f32.mxu0 0.0
    %1108 = vmatmul.mubr.f32.gmra.mxu0 %v955
    %v1109 = vpop.f32.mrf.mxu0
    %v1110 = vadd.f32 0.0, %v1109
    %v1111 = vpop.f32.mrf.mxu0
    %1112 = vmatprep.mubr.f32.mxu0 0.0
    %1113 = vmatmul.mubr.f32.gmra.mxu0 %v958
    %v1114 = vpop.f32.mrf.mxu0
    %v1115 = vadd.f32 0.0, %v1114
    %v1116 = vpop.f32.mrf.mxu0
    %1117 = vmatprep.mubr.f32.mxu0 0.0
    %1118 = vmatmul.mubr.f32.gmra.mxu0 %v961
    %v1119 = vpop.f32.mrf.mxu0
    %v1120 = vpop.f32.mrf.mxu0
    %1121 = vdwg.mxu0
    %v1122 = vld [vmem:[#allocation5 + $0x70] sm:$0xff]
    %v1123 = vld [vmem:[#allocation7 + $0x4] sm:$0x1]
    %v1124 = vlaneseq
    %v1125 = vshrl.u32 %v1124, 7
    %v1126 = vsub.s32 0, %v1125
    %v1127 = vrot.slane %v1123, %v1126
    %v1129 = vsel %vm385, %v881, 0
    %v1132 = vsel %vm385, %v886, 0
    %v1135 = vsel %vm385, %v891, 0
    %v1138 = vsel %vm385, %v896, 0
    %v1141 = vsel %vm385, %v901, 0
    %v1144 = vsel %vm385, %v906, 0
    %v1147 = vsel %vm385, %v911, 0
    %v1150 = vsel %vm385, %v916, 0
    %v1153 = vsel %vm385, %v921, 0
    %v1156 = vsel %vm385, %v926, 0
    %v1159 = vsel %vm385, %v931, 0
    %v1162 = vsel %vm385, %v936, 0
    %v1165 = vsel %vm385, %v941, 0
    %v1168 = vsel %vm385, %v946, 0
    %v1171 = vsel %vm385, %v1030, 0
    %v1174 = vsel %vm385, %v1035, 0
    %v1177 = vsel %vm385, %v1040, 0
    %v1180 = vsel %vm385, %v1045, 0
    %v1183 = vsel %vm385, %v1050, 0
    %v1186 = vsel %vm385, %v1055, 0
    %v1189 = vsel %vm385, %v1060, 0
    %v1192 = vsel %vm385, %v1065, 0
    %v1195 = vsel %vm385, %v1070, 0
    %v1198 = vsel %vm385, %v1075, 0
    %v1201 = vsel %vm385, %v1080, 0
    %v1204 = vsel %vm385, %v1085, 0
    %v1207 = vsel %vm385, %v1090, 0
    %v1210 = vsel %vm385, %v1095, 0
    %v1213 = vsel %vm385, %v1100, 0
    %v1216 = vsel %vm385, %v1105, 0
    %v1219 = vsel %vm385, %v1110, 0
    %v1222 = vsel %vm385, %v1115, 0
    %1224 = vmatprep.subr.mxu0 0.0
    %1225 = vmatpush1.msra.mxu0 0.0
    %1226 = vmatprep.subr.mxu0 0.0
    %1227 = vmatpush1.msra.mxu0 0.0
    %1228 = vmatprep.subr.mxu0 0.0
    %1229 = vmatpush1.msra.mxu0 0.0
    %1230 = vmatprep.subr.mxu0 0.0
    %1231 = vmatpush1.msra.mxu0 0.0
    %1232 = vmatprep.subr.mxu0 0.0
    %1233 = vmatpush1.msra.mxu0 0.0
    %1234 = vmatprep.subr.mxu0 0.0
    %1235 = vmatpush1.msra.mxu0 0.0
    %1236 = vmatprep.subr.mxu0 0.0
    %1237 = vmatpush1.msra.mxu0 0.0
    %1238 = vmatprep.subr.mxu0 0.0
    %1239 = vmatpush1.msra.mxu0 0.0
    %1240 = vmatprep.subr.mxu0 0.0
    %1241 = vmatpush1.msra.mxu0 0.0
    %1242 = vmatprep.subr.mxu0 0.0
    %1243 = vmatpush1.msra.mxu0 0.0
    %1244 = vmatprep.subr.mxu0 0.0
    %1245 = vmatpush1.msra.mxu0 0.0
    %1246 = vmatprep.subr.mxu0 0.0
    %1247 = vmatpush1.msra.mxu0 0.0
    %1248 = vmatprep.subr.mxu0 0.0
    %1249 = vmatpush1.msra.mxu0 0.0
    %1250 = vmatprep.subr.mxu0 0.0
    %1251 = vmatpush1.msra.mxu0 0.0
    %1252 = vmatprep.subr.mxu0 0.0
    %1253 = vmatpush1.msra.mxu0 0.0
    %1254 = vmatprep.subr.mxu0 0.0
    %1255 = vmatpush1.msra.mxu0 %v1122
    %1256 = vmatprep.subr.mxu0 0.0
    %1257 = vmatpush2.msra.mxu0 0.0
    %1258 = vmatprep.subr.mxu0 0.0
    %1259 = vmatpush2.msra.mxu0 0.0
    %1260 = vmatprep.subr.mxu0 0.0
    %1261 = vmatpush2.msra.mxu0 0.0
    %1262 = vmatprep.subr.mxu0 0.0
    %1263 = vmatpush2.msra.mxu0 0.0
    %1264 = vmatprep.subr.mxu0 0.0
    %1265 = vmatpush2.msra.mxu0 0.0
    %1266 = vmatprep.subr.mxu0 0.0
    %1267 = vmatpush2.msra.mxu0 0.0
    %1268 = vmatprep.subr.mxu0 0.0
    %1269 = vmatpush2.msra.mxu0 0.0
    %1270 = vmatprep.subr.mxu0 0.0
    %1271 = vmatpush2.msra.mxu0 0.0
    %1272 = vmatprep.subr.mxu0 0.0
    %1273 = vmatpush2.msra.mxu0 0.0
    %1274 = vmatprep.subr.mxu0 0.0
    %1275 = vmatpush2.msra.mxu0 0.0
    %1276 = vmatprep.subr.mxu0 0.0
    %1277 = vmatpush2.msra.mxu0 0.0
    %1278 = vmatprep.subr.mxu0 0.0
    %1279 = vmatpush2.msra.mxu0 0.0
    %1280 = vmatprep.subr.mxu0 0.0
    %1281 = vmatpush2.msra.mxu0 0.0
    %1282 = vmatprep.subr.mxu0 0.0
    %1283 = vmatpush2.msra.mxu0 0.0
    %1284 = vmatprep.subr.mxu0 0.0
    %1285 = vmatpush2.msra.mxu0 0.0
    %1286 = vmatprep.subr.mxu0 0.0
    %1287 = vmatpush2.msra.mxu0 0.0
    %1288 = vmatprep.mubr.f32.mxu0 0.0
    %1289 = vmatmul.mubr.f32.gmra.mxu0 %v387
    %v1290 = vpop.f32.mrf.mxu0
    %v1291 = vadd.f32 %v1127, %v1290
    %v1292 = vpop.f32.mrf.mxu0
    %1293 = vmatprep.mubr.f32.mxu0 0.0
    %1294 = vmatmul.mubr.f32.gmra.mxu0 %v468
    %v1295 = vpop.f32.mrf.mxu0
    %v1296 = vadd.f32 %v1127, %v1295
    %v1297 = vpop.f32.mrf.mxu0
    %1298 = vmatprep.mubr.f32.mxu0 0.0
    %1299 = vmatmul.mubr.f32.gmra.mxu0 %v554
    %v1300 = vpop.f32.mrf.mxu0
    %v1301 = vadd.f32 %v1127, %v1300
    %v1302 = vpop.f32.mrf.mxu0
    %1303 = vmatprep.mubr.f32.mxu0 0.0
    %1304 = vmatmul.mubr.f32.gmra.mxu0 %v557
    %v1305 = vpop.f32.mrf.mxu0
    %v1306 = vadd.f32 %v1127, %v1305
    %v1307 = vpop.f32.mrf.mxu0
    %1308 = vmatprep.mubr.f32.mxu0 0.0
    %1309 = vmatmul.mubr.f32.gmra.mxu0 %v653
    %v1310 = vpop.f32.mrf.mxu0
    %v1311 = vadd.f32 %v1127, %v1310
    %v1312 = vpop.f32.mrf.mxu0
    %1313 = vmatprep.mubr.f32.mxu0 0.0
    %1314 = vmatmul.mubr.f32.gmra.mxu0 %v656
    %v1315 = vpop.f32.mrf.mxu0
    %v1316 = vadd.f32 %v1127, %v1315
    %v1317 = vpop.f32.mrf.mxu0
    %1318 = vmatprep.mubr.f32.mxu0 0.0
    %1319 = vmatmul.mubr.f32.gmra.mxu0 %v659
    %v1320 = vpop.f32.mrf.mxu0
    %v1321 = vadd.f32 %v1127, %v1320
    %v1322 = vpop.f32.mrf.mxu0
    %1323 = vmatprep.mubr.f32.mxu0 0.0
    %1324 = vmatmul.mubr.f32.gmra.mxu0 %v662
    %v1325 = vpop.f32.mrf.mxu0
    %v1326 = vadd.f32 %v1127, %v1325
    %v1327 = vpop.f32.mrf.mxu0
    %1328 = vmatprep.mubr.f32.mxu0 0.0
    %1329 = vmatmul.mubr.f32.gmra.mxu0 %v778
    %v1330 = vpop.f32.mrf.mxu0
    %v1331 = vadd.f32 %v1127, %v1330
    %v1332 = vpop.f32.mrf.mxu0
    %1333 = vmatprep.mubr.f32.mxu0 0.0
    %1334 = vmatmul.mubr.f32.gmra.mxu0 %v781
    %v1335 = vpop.f32.mrf.mxu0
    %v1336 = vadd.f32 %v1127, %v1335
    %v1337 = vpop.f32.mrf.mxu0
    %1338 = vmatprep.mubr.f32.mxu0 0.0
    %1339 = vmatmul.mubr.f32.gmra.mxu0 %v784
    %v1340 = vpop.f32.mrf.mxu0
    %v1341 = vadd.f32 %v1127, %v1340
    %v1342 = vpop.f32.mrf.mxu0
    %1343 = vmatprep.mubr.f32.mxu0 0.0
    %1344 = vmatmul.mubr.f32.gmra.mxu0 %v787
    %v1345 = vpop.f32.mrf.mxu0
    %v1346 = vadd.f32 %v1127, %v1345
    %v1347 = vpop.f32.mrf.mxu0
    %1348 = vmatprep.mubr.f32.mxu0 0.0
    %1349 = vmatmul.mubr.f32.gmra.mxu0 %v790
    %v1350 = vpop.f32.mrf.mxu0
    %v1351 = vadd.f32 %v1127, %v1350
    %v1352 = vpop.f32.mrf.mxu0
    %1353 = vmatprep.mubr.f32.mxu0 0.0
    %1354 = vmatmul.mubr.f32.gmra.mxu0 %v793
    %v1355 = vpop.f32.mrf.mxu0
    %v1356 = vadd.f32 %v1127, %v1355
    %v1357 = vpop.f32.mrf.mxu0
    %1358 = vmatprep.mubr.f32.mxu0 0.0
    %1359 = vmatmul.mubr.f32.gmra.mxu0 %v796
    %v1360 = vpop.f32.mrf.mxu0
    %v1361 = vadd.f32 %v1127, %v1360
    %v1362 = vpop.f32.mrf.mxu0
    %1363 = vmatprep.mubr.f32.mxu0 0.0
    %1364 = vmatmul.mubr.f32.gmra.mxu0 %v799
    %v1365 = vpop.f32.mrf.mxu0
    %v1366 = vadd.f32 %v1127, %v1365
    %v1367 = vpop.f32.mrf.mxu0
    %1368 = vmatprep.mubr.f32.mxu0 0.0
    %1369 = vmatmul.mubr.f32.gmra.mxu0 %v955
    %v1370 = vpop.f32.mrf.mxu0
    %v1371 = vadd.f32 %v1127, %v1370
    %v1372 = vpop.f32.mrf.mxu0
    %1373 = vmatprep.mubr.f32.mxu0 0.0
    %1374 = vmatmul.mubr.f32.gmra.mxu0 %v958
    %v1375 = vpop.f32.mrf.mxu0
    %v1376 = vadd.f32 %v1127, %v1375
    %v1377 = vpop.f32.mrf.mxu0
    %1378 = vmatprep.mubr.f32.mxu0 0.0
    %1379 = vmatmul.mubr.f32.gmra.mxu0 %v1129
    %v1380 = vpop.f32.mrf.mxu0
    %v1381 = vadd.f32 %v1127, %v1380
    %v1382 = vpop.f32.mrf.mxu0
    %1383 = vmatprep.mubr.f32.mxu0 0.0
    %1384 = vmatmul.mubr.f32.gmra.mxu0 %v1132
    %v1385 = vpop.f32.mrf.mxu0
    %v1386 = vadd.f32 %v1127, %v1385
    %v1387 = vpop.f32.mrf.mxu0
    %1388 = vmatprep.mubr.f32.mxu0 0.0
    %1389 = vmatmul.mubr.f32.gmra.mxu0 %v1135
    %v1390 = vpop.f32.mrf.mxu0
    %v1391 = vadd.f32 %v1127, %v1390
    %v1392 = vpop.f32.mrf.mxu0
    %1393 = vmatprep.mubr.f32.mxu0 0.0
    %1394 = vmatmul.mubr.f32.gmra.mxu0 %v1138
    %v1395 = vpop.f32.mrf.mxu0
    %v1396 = vadd.f32 %v1127, %v1395
    %v1397 = vpop.f32.mrf.mxu0
    %1398 = vmatprep.mubr.f32.mxu0 0.0
    %1399 = vmatmul.mubr.f32.gmra.mxu0 %v1141
    %v1400 = vpop.f32.mrf.mxu0
    %v1401 = vadd.f32 %v1127, %v1400
    %v1402 = vpop.f32.mrf.mxu0
    %1403 = vmatprep.mubr.f32.mxu0 0.0
    %1404 = vmatmul.mubr.f32.gmra.mxu0 %v1144
    %v1405 = vpop.f32.mrf.mxu0
    %v1406 = vadd.f32 %v1127, %v1405
    %v1407 = vpop.f32.mrf.mxu0
    %1408 = vmatprep.mubr.f32.mxu0 0.0
    %1409 = vmatmul.mubr.f32.gmra.mxu0 %v1147
    %v1410 = vpop.f32.mrf.mxu0
    %v1411 = vadd.f32 %v1127, %v1410
    %v1412 = vpop.f32.mrf.mxu0
    %1413 = vmatprep.mubr.f32.mxu0 0.0
    %1414 = vmatmul.mubr.f32.gmra.mxu0 %v1150
    %v1415 = vpop.f32.mrf.mxu0
    %v1416 = vadd.f32 %v1127, %v1415
    %v1417 = vpop.f32.mrf.mxu0
    %1418 = vmatprep.mubr.f32.mxu0 0.0
    %1419 = vmatmul.mubr.f32.gmra.mxu0 %v1153
    %v1420 = vpop.f32.mrf.mxu0
    %v1421 = vadd.f32 %v1127, %v1420
    %v1422 = vpop.f32.mrf.mxu0
    %1423 = vmatprep.mubr.f32.mxu0 0.0
    %1424 = vmatmul.mubr.f32.gmra.mxu0 %v1156
    %v1425 = vpop.f32.mrf.mxu0
    %v1426 = vadd.f32 %v1127, %v1425
    %v1427 = vpop.f32.mrf.mxu0
    %1428 = vmatprep.mubr.f32.mxu0 0.0
    %1429 = vmatmul.mubr.f32.gmra.mxu0 %v1159
    %v1430 = vpop.f32.mrf.mxu0
    %v1431 = vadd.f32 %v1127, %v1430
    %v1432 = vpop.f32.mrf.mxu0
    %1433 = vmatprep.mubr.f32.mxu0 0.0
    %1434 = vmatmul.mubr.f32.gmra.mxu0 %v1162
    %v1435 = vpop.f32.mrf.mxu0
    %v1436 = vadd.f32 %v1127, %v1435
    %v1437 = vpop.f32.mrf.mxu0
    %1438 = vmatprep.mubr.f32.mxu0 0.0
    %1439 = vmatmul.mubr.f32.gmra.mxu0 %v1165
    %v1440 = vpop.f32.mrf.mxu0
    %v1441 = vadd.f32 %v1127, %v1440
    %v1442 = vpop.f32.mrf.mxu0
    %1443 = vmatprep.mubr.f32.mxu0 0.0
    %1444 = vmatmul.mubr.f32.gmra.mxu0 %v1168
    %v1445 = vpop.f32.mrf.mxu0
    %v1446 = vadd.f32 %v1127, %v1445
    %v1447 = vpop.f32.mrf.mxu0
    %1448 = vmatprep.mubr.f32.mxu0 0.0
    %1449 = vmatmul.mubr.f32.gmra.mxu0 %v1171
    %v1450 = vpop.f32.mrf.mxu0
    %v1451 = vadd.f32 %v1127, %v1450
    %v1452 = vpop.f32.mrf.mxu0
    %1453 = vmatprep.mubr.f32.mxu0 0.0
    %1454 = vmatmul.mubr.f32.gmra.mxu0 %v1174
    %v1455 = vpop.f32.mrf.mxu0
    %v1456 = vadd.f32 %v1127, %v1455
    %v1457 = vpop.f32.mrf.mxu0
    %1458 = vmatprep.mubr.f32.mxu0 0.0
    %1459 = vmatmul.mubr.f32.gmra.mxu0 %v1177
    %v1460 = vpop.f32.mrf.mxu0
    %v1461 = vadd.f32 %v1127, %v1460
    %v1462 = vpop.f32.mrf.mxu0
    %1463 = vmatprep.mubr.f32.mxu0 0.0
    %1464 = vmatmul.mubr.f32.gmra.mxu0 %v1180
    %v1465 = vpop.f32.mrf.mxu0
    %v1466 = vadd.f32 %v1127, %v1465
    %v1467 = vpop.f32.mrf.mxu0
    %1468 = vmatprep.mubr.f32.mxu0 0.0
    %1469 = vmatmul.mubr.f32.gmra.mxu0 %v1183
    %v1470 = vpop.f32.mrf.mxu0
    %v1471 = vadd.f32 %v1127, %v1470
    %v1472 = vpop.f32.mrf.mxu0
    %1473 = vmatprep.mubr.f32.mxu0 0.0
    %1474 = vmatmul.mubr.f32.gmra.mxu0 %v1186
    %v1475 = vpop.f32.mrf.mxu0
    %v1476 = vadd.f32 %v1127, %v1475
    %v1477 = vpop.f32.mrf.mxu0
    %1478 = vmatprep.mubr.f32.mxu0 0.0
    %1479 = vmatmul.mubr.f32.gmra.mxu0 %v1189
    %v1480 = vpop.f32.mrf.mxu0
    %v1481 = vadd.f32 %v1127, %v1480
    %v1482 = vpop.f32.mrf.mxu0
    %1483 = vmatprep.mubr.f32.mxu0 0.0
    %1484 = vmatmul.mubr.f32.gmra.mxu0 %v1192
    %v1485 = vpop.f32.mrf.mxu0
    %v1486 = vadd.f32 %v1127, %v1485
    %v1487 = vpop.f32.mrf.mxu0
    %1488 = vmatprep.mubr.f32.mxu0 0.0
    %1489 = vmatmul.mubr.f32.gmra.mxu0 %v1195
    %v1490 = vpop.f32.mrf.mxu0
    %v1491 = vadd.f32 %v1127, %v1490
    %v1492 = vpop.f32.mrf.mxu0
    %1493 = vmatprep.mubr.f32.mxu0 0.0
    %1494 = vmatmul.mubr.f32.gmra.mxu0 %v1198
    %v1495 = vpop.f32.mrf.mxu0
    %v1496 = vadd.f32 %v1127, %v1495
    %v1497 = vpop.f32.mrf.mxu0
    %1498 = vmatprep.mubr.f32.mxu0 0.0
    %1499 = vmatmul.mubr.f32.gmra.mxu0 %v1201
    %v1500 = vpop.f32.mrf.mxu0
    %v1501 = vadd.f32 %v1127, %v1500
    %v1502 = vpop.f32.mrf.mxu0
    %1503 = vmatprep.mubr.f32.mxu0 0.0
    %1504 = vmatmul.mubr.f32.gmra.mxu0 %v1204
    %v1505 = vpop.f32.mrf.mxu0
    %v1506 = vadd.f32 %v1127, %v1505
    %v1507 = vpop.f32.mrf.mxu0
    %1508 = vmatprep.mubr.f32.mxu0 0.0
    %1509 = vmatmul.mubr.f32.gmra.mxu0 %v1207
    %v1510 = vpop.f32.mrf.mxu0
    %v1511 = vadd.f32 %v1127, %v1510
    %v1512 = vpop.f32.mrf.mxu0
    %1513 = vmatprep.mubr.f32.mxu0 0.0
    %1514 = vmatmul.mubr.f32.gmra.mxu0 %v1210
    %v1515 = vpop.f32.mrf.mxu0
    %v1516 = vadd.f32 %v1127, %v1515
    %v1517 = vpop.f32.mrf.mxu0
    %1518 = vmatprep.mubr.f32.mxu0 0.0
    %1519 = vmatmul.mubr.f32.gmra.mxu0 %v1213
    %v1520 = vpop.f32.mrf.mxu0
    %v1521 = vadd.f32 %v1127, %v1520
    %v1522 = vpop.f32.mrf.mxu0
    %1523 = vmatprep.mubr.f32.mxu0 0.0
    %1524 = vmatmul.mubr.f32.gmra.mxu0 %v1216
    %v1525 = vpop.f32.mrf.mxu0
    %v1526 = vadd.f32 %v1127, %v1525
    %v1527 = vpop.f32.mrf.mxu0
    %1528 = vmatprep.mubr.f32.mxu0 0.0
    %1529 = vmatmul.mubr.f32.gmra.mxu0 %v1219
    %v1530 = vpop.f32.mrf.mxu0
    %v1531 = vadd.f32 %v1127, %v1530
    %v1532 = vpop.f32.mrf.mxu0
    %1533 = vmatprep.mubr.f32.mxu0 0.0
    %1534 = vmatmul.mubr.f32.gmra.mxu0 %v1222
    %v1535 = vpop.f32.mrf.mxu0
    %v1536 = vadd.f32 %v1127, %v1535
    %v1537 = vpop.f32.mrf.mxu0
    %1538 = vdwg.mxu0
    %v1539 = vmax.f32 %v1291, 0.0
    %v1540 = vmax.f32 %v1296, 0.0
    %v1541 = vmax.f32 %v1301, 0.0
    %v1542 = vmax.f32 %v1306, 0.0
    %v1543 = vmax.f32 %v1311, 0.0
    %v1544 = vmax.f32 %v1316, 0.0
    %v1545 = vmax.f32 %v1321, 0.0
    %v1546 = vmax.f32 %v1326, 0.0
    %v1547 = vmax.f32 %v1331, 0.0
    %v1548 = vmax.f32 %v1336, 0.0
    %v1549 = vmax.f32 %v1341, 0.0
    %v1550 = vmax.f32 %v1346, 0.0
    %v1551 = vmax.f32 %v1351, 0.0
    %v1552 = vmax.f32 %v1356, 0.0
    %v1553 = vmax.f32 %v1361, 0.0
    %v1554 = vmax.f32 %v1366, 0.0
    %v1555 = vmax.f32 %v1371, 0.0
    %v1556 = vmax.f32 %v1376, 0.0
    %v1557 = vmax.f32 %v1381, 0.0
    %v1558 = vmax.f32 %v1386, 0.0
    %v1559 = vmax.f32 %v1391, 0.0
    %v1560 = vmax.f32 %v1396, 0.0
    %v1561 = vmax.f32 %v1401, 0.0
    %v1562 = vmax.f32 %v1406, 0.0
    %v1563 = vmax.f32 %v1411, 0.0
    %v1564 = vmax.f32 %v1416, 0.0
    %v1565 = vmax.f32 %v1421, 0.0
    %v1566 = vmax.f32 %v1426, 0.0
    %v1567 = vmax.f32 %v1431, 0.0
    %v1568 = vmax.f32 %v1436, 0.0
    %v1569 = vmax.f32 %v1441, 0.0
    %v1570 = vmax.f32 %v1446, 0.0
    %v1571 = vmax.f32 %v1451, 0.0
    %v1572 = vmax.f32 %v1456, 0.0
    %v1573 = vmax.f32 %v1461, 0.0
    %v1574 = vmax.f32 %v1466, 0.0
    %v1575 = vmax.f32 %v1471, 0.0
    %v1576 = vmax.f32 %v1476, 0.0
    %v1577 = vmax.f32 %v1481, 0.0
    %v1578 = vmax.f32 %v1486, 0.0
    %v1579 = vmax.f32 %v1491, 0.0
    %v1580 = vmax.f32 %v1496, 0.0
    %v1581 = vmax.f32 %v1501, 0.0
    %v1582 = vmax.f32 %v1506, 0.0
    %v1583 = vmax.f32 %v1511, 0.0
    %v1584 = vmax.f32 %v1516, 0.0
    %v1585 = vmax.f32 %v1521, 0.0
    %v1586 = vmax.f32 %v1526, 0.0
    %v1587 = vmax.f32 %v1531, 0.0
    %v1588 = vmax.f32 %v1536, 0.0
    %v1589 = vld [vmem:[#allocation5 + $0x78] sm:$0xff]
    %v1590 = vld [vmem:[#allocation5 + $0x80] sm:$0xff]
    %v1591 = vld [vmem:[#allocation5 + $0x88] sm:$0xff]
    %v1592 = vld [vmem:[#allocation5 + $0x90] sm:$0xff]
    %v1593 = vld [vmem:[#allocation7 + $0x5] sm:$0x1]
    %v1594 = vlaneseq
    %v1595 = vshrl.u32 %v1594, 7
    %v1596 = vsub.s32 0, %v1595
    %v1597 = vrot.slane %v1593, %v1596
    %v1599 = vsel %vm144, %v1539, 0
    %v1602 = vsel %vm144, %v1540, 0
    %v1605 = vsel %vm144, %v1541, 0
    %v1608 = vsel %vm144, %v1542, 0
    %v1611 = vsel %vm144, %v1543, 0
    %v1614 = vsel %vm144, %v1544, 0
    %v1617 = vsel %vm144, %v1545, 0
    %v1620 = vsel %vm144, %v1546, 0
    %v1623 = vsel %vm144, %v1547, 0
    %v1626 = vsel %vm144, %v1548, 0
    %v1629 = vsel %vm144, %v1549, 0
    %v1632 = vsel %vm144, %v1550, 0
    %v1635 = vsel %vm144, %v1551, 0
    %v1638 = vsel %vm144, %v1552, 0
    %v1641 = vsel %vm144, %v1553, 0
    %v1644 = vsel %vm144, %v1554, 0
    %v1647 = vsel %vm144, %v1555, 0
    %v1650 = vsel %vm144, %v1556, 0
    %v1653 = vsel %vm144, %v1557, 0
    %v1656 = vsel %vm144, %v1558, 0
    %v1659 = vsel %vm144, %v1559, 0
    %v1662 = vsel %vm144, %v1560, 0
    %v1665 = vsel %vm144, %v1561, 0
    %v1668 = vsel %vm144, %v1562, 0
    %v1671 = vsel %vm144, %v1563, 0
    %v1674 = vsel %vm144, %v1564, 0
    %v1677 = vsel %vm144, %v1565, 0
    %v1680 = vsel %vm144, %v1566, 0
    %v1683 = vsel %vm144, %v1567, 0
    %v1686 = vsel %vm144, %v1568, 0
    %v1689 = vsel %vm144, %v1569, 0
    %v1692 = vsel %vm144, %v1570, 0
    %v1695 = vsel %vm144, %v1571, 0
    %v1698 = vsel %vm144, %v1572, 0
    %v1701 = vsel %vm144, %v1573, 0
    %v1704 = vsel %vm144, %v1574, 0
    %v1707 = vsel %vm144, %v1575, 0
    %v1710 = vsel %vm144, %v1576, 0
    %v1713 = vsel %vm144, %v1577, 0
    %v1716 = vsel %vm144, %v1578, 0
    %v1719 = vsel %vm144, %v1579, 0
    %v1722 = vsel %vm144, %v1580, 0
    %v1725 = vsel %vm144, %v1581, 0
    %v1728 = vsel %vm144, %v1582, 0
    %v1731 = vsel %vm144, %v1583, 0
    %v1734 = vsel %vm144, %v1584, 0
    %v1737 = vsel %vm144, %v1585, 0
    %v1740 = vsel %vm144, %v1586, 0
    %v1743 = vsel %vm144, %v1587, 0
    %v1746 = vsel %vm144, %v1588, 0
    %1748 = vmatprep.subr.mxu0 0.0
    %1749 = vmatpush1.msra.mxu0 0.0
    %1750 = vmatprep.subr.mxu0 0.0
    %1751 = vmatpush1.msra.mxu0 0.0
    %1752 = vmatprep.subr.mxu0 0.0
    %1753 = vmatpush1.msra.mxu0 0.0
    %1754 = vmatprep.subr.mxu0 0.0
    %1755 = vmatpush1.msra.mxu0 0.0
    %1756 = vmatprep.subr.mxu0 0.0
    %1757 = vmatpush1.msra.mxu0 0.0
    %1758 = vmatprep.subr.mxu0 0.0
    %1759 = vmatpush1.msra.mxu0 0.0
    %1760 = vmatprep.subr.mxu0 0.0
    %1761 = vmatpush1.msra.mxu0 0.0
    %1762 = vmatprep.subr.mxu0 0.0
    %1763 = vmatpush1.msra.mxu0 0.0
    %1764 = vmatprep.subr.mxu0 0.0
    %1765 = vmatpush1.msra.mxu0 0.0
    %1766 = vmatprep.subr.mxu0 0.0
    %1767 = vmatpush1.msra.mxu0 0.0
    %1768 = vmatprep.subr.mxu0 0.0
    %1769 = vmatpush1.msra.mxu0 0.0
    %1770 = vmatprep.subr.mxu0 0.0
    %1771 = vmatpush1.msra.mxu0 0.0
    %1772 = vmatprep.subr.mxu0 0.0
    %1773 = vmatpush1.msra.mxu0 %v1592
    %1774 = vmatprep.subr.mxu0 0.0
    %1775 = vmatpush1.msra.mxu0 %v1591
    %1776 = vmatprep.subr.mxu0 0.0
    %1777 = vmatpush1.msra.mxu0 %v1590
    %1778 = vmatprep.subr.mxu0 0.0
    %1779 = vmatpush1.msra.mxu0 %v1589
    %1780 = vmatprep.subr.mxu0 0.0
    %1781 = vmatpush2.msra.mxu0 0.0
    %1782 = vmatprep.subr.mxu0 0.0
    %1783 = vmatpush2.msra.mxu0 0.0
    %1784 = vmatprep.subr.mxu0 0.0
    %1785 = vmatpush2.msra.mxu0 0.0
    %1786 = vmatprep.subr.mxu0 0.0
    %1787 = vmatpush2.msra.mxu0 0.0
    %1788 = vmatprep.subr.mxu0 0.0
    %1789 = vmatpush2.msra.mxu0 0.0
    %1790 = vmatprep.subr.mxu0 0.0
    %1791 = vmatpush2.msra.mxu0 0.0
    %1792 = vmatprep.subr.mxu0 0.0
    %1793 = vmatpush2.msra.mxu0 0.0
    %1794 = vmatprep.subr.mxu0 0.0
    %1795 = vmatpush2.msra.mxu0 0.0
    %1796 = vmatprep.subr.mxu0 0.0
    %1797 = vmatpush2.msra.mxu0 0.0
    %1798 = vmatprep.subr.mxu0 0.0
    %1799 = vmatpush2.msra.mxu0 0.0
    %1800 = vmatprep.subr.mxu0 0.0
    %1801 = vmatpush2.msra.mxu0 0.0
    %1802 = vmatprep.subr.mxu0 0.0
    %1803 = vmatpush2.msra.mxu0 0.0
    %1804 = vmatprep.subr.mxu0 0.0
    %1805 = vmatpush2.msra.mxu0 0.0
    %1806 = vmatprep.subr.mxu0 0.0
    %1807 = vmatpush2.msra.mxu0 0.0
    %1808 = vmatprep.subr.mxu0 0.0
    %1809 = vmatpush2.msra.mxu0 0.0
    %1810 = vmatprep.subr.mxu0 0.0
    %1811 = vmatpush2.msra.mxu0 0.0
    %1812 = vmatprep.mubr.f32.mxu0 0.0
    %1813 = vmatmul.mubr.f32.gmra.mxu0 %v1599
    %v1814 = vpop.f32.mrf.mxu0
    %v1815 = vadd.f32 %v1597, %v1814
    %v1816 = vpop.f32.mrf.mxu0
    %1817 = vmatprep.mubr.f32.mxu0 0.0
    %1818 = vmatmul.mubr.f32.gmra.mxu0 %v1602
    %v1819 = vpop.f32.mrf.mxu0
    %v1820 = vadd.f32 %v1597, %v1819
    %v1821 = vpop.f32.mrf.mxu0
    %1822 = vmatprep.mubr.f32.mxu0 0.0
    %1823 = vmatmul.mubr.f32.gmra.mxu0 %v1605
    %v1824 = vpop.f32.mrf.mxu0
    %v1825 = vadd.f32 %v1597, %v1824
    %v1826 = vpop.f32.mrf.mxu0
    %1827 = vmatprep.mubr.f32.mxu0 0.0
    %1828 = vmatmul.mubr.f32.gmra.mxu0 %v1608
    %v1829 = vpop.f32.mrf.mxu0
    %v1830 = vadd.f32 %v1597, %v1829
    %v1831 = vpop.f32.mrf.mxu0
    %1832 = vmatprep.mubr.f32.mxu0 0.0
    %1833 = vmatmul.mubr.f32.gmra.mxu0 %v1611
    %v1834 = vpop.f32.mrf.mxu0
    %v1835 = vadd.f32 %v1597, %v1834
    %v1836 = vpop.f32.mrf.mxu0
    %1837 = vmatprep.mubr.f32.mxu0 0.0
    %1838 = vmatmul.mubr.f32.gmra.mxu0 %v1614
    %v1839 = vpop.f32.mrf.mxu0
    %v1840 = vadd.f32 %v1597, %v1839
    %v1841 = vpop.f32.mrf.mxu0
    %1842 = vmatprep.mubr.f32.mxu0 0.0
    %1843 = vmatmul.mubr.f32.gmra.mxu0 %v1617
    %v1844 = vpop.f32.mrf.mxu0
    %v1845 = vadd.f32 %v1597, %v1844
    %v1846 = vpop.f32.mrf.mxu0
    %1847 = vmatprep.mubr.f32.mxu0 0.0
    %1848 = vmatmul.mubr.f32.gmra.mxu0 %v1620
    %v1849 = vpop.f32.mrf.mxu0
    %v1850 = vadd.f32 %v1597, %v1849
    %v1851 = vpop.f32.mrf.mxu0
    %1852 = vmatprep.mubr.f32.mxu0 0.0
    %1853 = vmatmul.mubr.f32.gmra.mxu0 %v1623
    %v1854 = vpop.f32.mrf.mxu0
    %v1855 = vadd.f32 %v1597, %v1854
    %v1856 = vpop.f32.mrf.mxu0
    %1857 = vmatprep.mubr.f32.mxu0 0.0
    %1858 = vmatmul.mubr.f32.gmra.mxu0 %v1626
    %v1859 = vpop.f32.mrf.mxu0
    %v1860 = vadd.f32 %v1597, %v1859
    %v1861 = vpop.f32.mrf.mxu0
    %1862 = vmatprep.mubr.f32.mxu0 0.0
    %1863 = vmatmul.mubr.f32.gmra.mxu0 %v1629
    %v1864 = vpop.f32.mrf.mxu0
    %v1865 = vadd.f32 %v1597, %v1864
    %v1866 = vpop.f32.mrf.mxu0
    %1867 = vmatprep.mubr.f32.mxu0 0.0
    %1868 = vmatmul.mubr.f32.gmra.mxu0 %v1632
    %v1869 = vpop.f32.mrf.mxu0
    %v1870 = vadd.f32 %v1597, %v1869
    %v1871 = vpop.f32.mrf.mxu0
    %1872 = vmatprep.mubr.f32.mxu0 0.0
    %1873 = vmatmul.mubr.f32.gmra.mxu0 %v1635
    %v1874 = vpop.f32.mrf.mxu0
    %v1875 = vadd.f32 %v1597, %v1874
    %v1876 = vpop.f32.mrf.mxu0
    %1877 = vmatprep.mubr.f32.mxu0 0.0
    %1878 = vmatmul.mubr.f32.gmra.mxu0 %v1638
    %v1879 = vpop.f32.mrf.mxu0
    %v1880 = vadd.f32 %v1597, %v1879
    %v1881 = vpop.f32.mrf.mxu0
    %1882 = vmatprep.mubr.f32.mxu0 0.0
    %1883 = vmatmul.mubr.f32.gmra.mxu0 %v1641
    %v1884 = vpop.f32.mrf.mxu0
    %v1885 = vadd.f32 %v1597, %v1884
    %v1886 = vpop.f32.mrf.mxu0
    %1887 = vmatprep.mubr.f32.mxu0 0.0
    %1888 = vmatmul.mubr.f32.gmra.mxu0 %v1644
    %v1889 = vpop.f32.mrf.mxu0
    %v1890 = vadd.f32 %v1597, %v1889
    %v1891 = vpop.f32.mrf.mxu0
    %1892 = vmatprep.mubr.f32.mxu0 0.0
    %1893 = vmatmul.mubr.f32.gmra.mxu0 %v1647
    %v1894 = vpop.f32.mrf.mxu0
    %v1895 = vadd.f32 %v1597, %v1894
    %v1896 = vpop.f32.mrf.mxu0
    %1897 = vmatprep.mubr.f32.mxu0 0.0
    %1898 = vmatmul.mubr.f32.gmra.mxu0 %v1650
    %v1899 = vpop.f32.mrf.mxu0
    %v1900 = vadd.f32 %v1597, %v1899
    %v1901 = vpop.f32.mrf.mxu0
    %1902 = vmatprep.mubr.f32.mxu0 0.0
    %1903 = vmatmul.mubr.f32.gmra.mxu0 %v1653
    %v1904 = vpop.f32.mrf.mxu0
    %v1905 = vadd.f32 %v1597, %v1904
    %v1906 = vpop.f32.mrf.mxu0
    %1907 = vmatprep.mubr.f32.mxu0 0.0
    %1908 = vmatmul.mubr.f32.gmra.mxu0 %v1656
    %v1909 = vpop.f32.mrf.mxu0
    %v1910 = vadd.f32 %v1597, %v1909
    %v1911 = vpop.f32.mrf.mxu0
    %1912 = vmatprep.mubr.f32.mxu0 0.0
    %1913 = vmatmul.mubr.f32.gmra.mxu0 %v1659
    %v1914 = vpop.f32.mrf.mxu0
    %v1915 = vadd.f32 %v1597, %v1914
    %v1916 = vpop.f32.mrf.mxu0
    %1917 = vmatprep.mubr.f32.mxu0 0.0
    %1918 = vmatmul.mubr.f32.gmra.mxu0 %v1662
    %v1919 = vpop.f32.mrf.mxu0
    %v1920 = vadd.f32 %v1597, %v1919
    %v1921 = vpop.f32.mrf.mxu0
    %1922 = vmatprep.mubr.f32.mxu0 0.0
    %1923 = vmatmul.mubr.f32.gmra.mxu0 %v1665
    %v1924 = vpop.f32.mrf.mxu0
    %v1925 = vadd.f32 %v1597, %v1924
    %v1926 = vpop.f32.mrf.mxu0
    %1927 = vmatprep.mubr.f32.mxu0 0.0
    %1928 = vmatmul.mubr.f32.gmra.mxu0 %v1668
    %v1929 = vpop.f32.mrf.mxu0
    %v1930 = vadd.f32 %v1597, %v1929
    %v1931 = vpop.f32.mrf.mxu0
    %1932 = vmatprep.mubr.f32.mxu0 0.0
    %1933 = vmatmul.mubr.f32.gmra.mxu0 %v1671
    %v1934 = vpop.f32.mrf.mxu0
    %v1935 = vadd.f32 %v1597, %v1934
    %v1936 = vpop.f32.mrf.mxu0
    %1937 = vmatprep.mubr.f32.mxu0 0.0
    %1938 = vmatmul.mubr.f32.gmra.mxu0 %v1674
    %v1939 = vpop.f32.mrf.mxu0
    %v1940 = vadd.f32 %v1597, %v1939
    %v1941 = vpop.f32.mrf.mxu0
    %1942 = vmatprep.mubr.f32.mxu0 0.0
    %1943 = vmatmul.mubr.f32.gmra.mxu0 %v1677
    %v1944 = vpop.f32.mrf.mxu0
    %v1945 = vadd.f32 %v1597, %v1944
    %v1946 = vpop.f32.mrf.mxu0
    %1947 = vmatprep.mubr.f32.mxu0 0.0
    %1948 = vmatmul.mubr.f32.gmra.mxu0 %v1680
    %v1949 = vpop.f32.mrf.mxu0
    %v1950 = vadd.f32 %v1597, %v1949
    %v1951 = vpop.f32.mrf.mxu0
    %1952 = vmatprep.mubr.f32.mxu0 0.0
    %1953 = vmatmul.mubr.f32.gmra.mxu0 %v1683
    %v1954 = vpop.f32.mrf.mxu0
    %v1955 = vadd.f32 %v1597, %v1954
    %v1956 = vpop.f32.mrf.mxu0
    %1957 = vmatprep.mubr.f32.mxu0 0.0
    %1958 = vmatmul.mubr.f32.gmra.mxu0 %v1686
    %v1959 = vpop.f32.mrf.mxu0
    %v1960 = vadd.f32 %v1597, %v1959
    %v1961 = vpop.f32.mrf.mxu0
    %1962 = vmatprep.mubr.f32.mxu0 0.0
    %1963 = vmatmul.mubr.f32.gmra.mxu0 %v1689
    %v1964 = vpop.f32.mrf.mxu0
    %v1965 = vadd.f32 %v1597, %v1964
    %v1966 = vpop.f32.mrf.mxu0
    %1967 = vmatprep.mubr.f32.mxu0 0.0
    %1968 = vmatmul.mubr.f32.gmra.mxu0 %v1692
    %v1969 = vpop.f32.mrf.mxu0
    %v1970 = vadd.f32 %v1597, %v1969
    %v1971 = vpop.f32.mrf.mxu0
    %1972 = vmatprep.mubr.f32.mxu0 0.0
    %1973 = vmatmul.mubr.f32.gmra.mxu0 %v1695
    %v1974 = vpop.f32.mrf.mxu0
    %v1975 = vadd.f32 %v1597, %v1974
    %v1976 = vpop.f32.mrf.mxu0
    %1977 = vmatprep.mubr.f32.mxu0 0.0
    %1978 = vmatmul.mubr.f32.gmra.mxu0 %v1698
    %v1979 = vpop.f32.mrf.mxu0
    %v1980 = vadd.f32 %v1597, %v1979
    %v1981 = vpop.f32.mrf.mxu0
    %1982 = vmatprep.mubr.f32.mxu0 0.0
    %1983 = vmatmul.mubr.f32.gmra.mxu0 %v1701
    %v1984 = vpop.f32.mrf.mxu0
    %v1985 = vadd.f32 %v1597, %v1984
    %v1986 = vpop.f32.mrf.mxu0
    %1987 = vmatprep.mubr.f32.mxu0 0.0
    %1988 = vmatmul.mubr.f32.gmra.mxu0 %v1704
    %v1989 = vpop.f32.mrf.mxu0
    %v1990 = vadd.f32 %v1597, %v1989
    %v1991 = vpop.f32.mrf.mxu0
    %1992 = vmatprep.mubr.f32.mxu0 0.0
    %1993 = vmatmul.mubr.f32.gmra.mxu0 %v1707
    %v1994 = vpop.f32.mrf.mxu0
    %v1995 = vadd.f32 %v1597, %v1994
    %v1996 = vpop.f32.mrf.mxu0
    %1997 = vmatprep.mubr.f32.mxu0 0.0
    %1998 = vmatmul.mubr.f32.gmra.mxu0 %v1710
    %v1999 = vpop.f32.mrf.mxu0
    %v2000 = vadd.f32 %v1597, %v1999
    %v2001 = vpop.f32.mrf.mxu0
    %2002 = vmatprep.mubr.f32.mxu0 0.0
    %2003 = vmatmul.mubr.f32.gmra.mxu0 %v1713
    %v2004 = vpop.f32.mrf.mxu0
    %v2005 = vadd.f32 %v1597, %v2004
    %v2006 = vpop.f32.mrf.mxu0
    %2007 = vmatprep.mubr.f32.mxu0 0.0
    %2008 = vmatmul.mubr.f32.gmra.mxu0 %v1716
    %v2009 = vpop.f32.mrf.mxu0
    %v2010 = vadd.f32 %v1597, %v2009
    %v2011 = vpop.f32.mrf.mxu0
    %2012 = vmatprep.mubr.f32.mxu0 0.0
    %2013 = vmatmul.mubr.f32.gmra.mxu0 %v1719
    %v2014 = vpop.f32.mrf.mxu0
    %v2015 = vadd.f32 %v1597, %v2014
    %v2016 = vpop.f32.mrf.mxu0
    %2017 = vmatprep.mubr.f32.mxu0 0.0
    %2018 = vmatmul.mubr.f32.gmra.mxu0 %v1722
    %v2019 = vpop.f32.mrf.mxu0
    %v2020 = vadd.f32 %v1597, %v2019
    %v2021 = vpop.f32.mrf.mxu0
    %2022 = vmatprep.mubr.f32.mxu0 0.0
    %2023 = vmatmul.mubr.f32.gmra.mxu0 %v1725
    %v2024 = vpop.f32.mrf.mxu0
    %v2025 = vadd.f32 %v1597, %v2024
    %v2026 = vpop.f32.mrf.mxu0
    %2027 = vmatprep.mubr.f32.mxu0 0.0
    %2028 = vmatmul.mubr.f32.gmra.mxu0 %v1728
    %v2029 = vpop.f32.mrf.mxu0
    %v2030 = vadd.f32 %v1597, %v2029
    %v2031 = vpop.f32.mrf.mxu0
    %2032 = vmatprep.mubr.f32.mxu0 0.0
    %2033 = vmatmul.mubr.f32.gmra.mxu0 %v1731
    %v2034 = vpop.f32.mrf.mxu0
    %v2035 = vadd.f32 %v1597, %v2034
    %v2036 = vpop.f32.mrf.mxu0
    %2037 = vmatprep.mubr.f32.mxu0 0.0
    %2038 = vmatmul.mubr.f32.gmra.mxu0 %v1734
    %v2039 = vpop.f32.mrf.mxu0
    %v2040 = vadd.f32 %v1597, %v2039
    %v2041 = vpop.f32.mrf.mxu0
    %2042 = vmatprep.mubr.f32.mxu0 0.0
    %2043 = vmatmul.mubr.f32.gmra.mxu0 %v1737
    %v2044 = vpop.f32.mrf.mxu0
    %v2045 = vadd.f32 %v1597, %v2044
    %v2046 = vpop.f32.mrf.mxu0
    %2047 = vmatprep.mubr.f32.mxu0 0.0
    %2048 = vmatmul.mubr.f32.gmra.mxu0 %v1740
    %v2049 = vpop.f32.mrf.mxu0
    %v2050 = vadd.f32 %v1597, %v2049
    %v2051 = vpop.f32.mrf.mxu0
    %2052 = vmatprep.mubr.f32.mxu0 0.0
    %2053 = vmatmul.mubr.f32.gmra.mxu0 %v1743
    %v2054 = vpop.f32.mrf.mxu0
    %v2055 = vadd.f32 %v1597, %v2054
    %v2056 = vpop.f32.mrf.mxu0
    %2057 = vmatprep.mubr.f32.mxu0 0.0
    %2058 = vmatmul.mubr.f32.gmra.mxu0 %v1746
    %v2059 = vpop.f32.mrf.mxu0
    %v2060 = vadd.f32 %v1597, %v2059
    %v2061 = vpop.f32.mrf.mxu0
    %2062 = vdwg.mxu0
    %v2063 = vmax.f32 %v1815, 0.0
    %v2064 = vmax.f32 %v1820, 0.0
    %v2065 = vmax.f32 %v1825, 0.0
    %v2066 = vmax.f32 %v1830, 0.0
    %v2067 = vmax.f32 %v1835, 0.0
    %v2068 = vmax.f32 %v1840, 0.0
    %v2069 = vmax.f32 %v1845, 0.0
    %v2070 = vmax.f32 %v1850, 0.0
    %v2071 = vmax.f32 %v1855, 0.0
    %v2072 = vmax.f32 %v1860, 0.0
    %v2073 = vmax.f32 %v1865, 0.0
    %v2074 = vmax.f32 %v1870, 0.0
    %v2075 = vmax.f32 %v1875, 0.0
    %v2076 = vmax.f32 %v1880, 0.0
    %v2077 = vmax.f32 %v1885, 0.0
    %v2078 = vmax.f32 %v1890, 0.0
    %v2079 = vmax.f32 %v1895, 0.0
    %v2080 = vmax.f32 %v1900, 0.0
    %v2081 = vmax.f32 %v1905, 0.0
    %v2082 = vmax.f32 %v1910, 0.0
    %v2083 = vmax.f32 %v1915, 0.0
    %v2084 = vmax.f32 %v1920, 0.0
    %v2085 = vmax.f32 %v1925, 0.0
    %v2086 = vmax.f32 %v1930, 0.0
    %v2087 = vmax.f32 %v1935, 0.0
    %v2088 = vmax.f32 %v1940, 0.0
    %v2089 = vmax.f32 %v1945, 0.0
    %v2090 = vmax.f32 %v1950, 0.0
    %v2091 = vmax.f32 %v1955, 0.0
    %v2092 = vmax.f32 %v1960, 0.0
    %v2093 = vmax.f32 %v1965, 0.0
    %v2094 = vmax.f32 %v1970, 0.0
    %v2095 = vmax.f32 %v1975, 0.0
    %v2096 = vmax.f32 %v1980, 0.0
    %v2097 = vmax.f32 %v1985, 0.0
    %v2098 = vmax.f32 %v1990, 0.0
    %v2099 = vmax.f32 %v1995, 0.0
    %v2100 = vmax.f32 %v2000, 0.0
    %v2101 = vmax.f32 %v2005, 0.0
    %v2102 = vmax.f32 %v2010, 0.0
    %v2103 = vmax.f32 %v2015, 0.0
    %v2104 = vmax.f32 %v2020, 0.0
    %v2105 = vmax.f32 %v2025, 0.0
    %v2106 = vmax.f32 %v2030, 0.0
    %v2107 = vmax.f32 %v2035, 0.0
    %v2108 = vmax.f32 %v2040, 0.0
    %v2109 = vmax.f32 %v2045, 0.0
    %v2110 = vmax.f32 %v2050, 0.0
    %v2111 = vmax.f32 %v2055, 0.0
    %v2112 = vmax.f32 %v2060, 0.0
    %v2113 = vld [vmem:[#allocation5 + $0x98] sm:$0xff]
    %v2114 = vld [vmem:[#allocation5 + $0xa0] sm:$0xff]
    %v2115 = vld [vmem:[#allocation5 + $0xa8] sm:$0xff]
    %v2116 = vld [vmem:[#allocation5 + $0xb0] sm:$0xff]
    %v2117 = vld [vmem:[#allocation7 + $0x6] sm:$0x1]
    %v2118 = vlaneseq
    %v2119 = vshrl.u32 %v2118, 7
    %v2120 = vsub.s32 0, %v2119
    %v2121 = vrot.slane %v2117, %v2120
    %v2123 = vsel %vm144, %v2063, 0
    %v2126 = vsel %vm144, %v2064, 0
    %v2129 = vsel %vm144, %v2065, 0
    %v2132 = vsel %vm144, %v2066, 0
    %v2135 = vsel %vm144, %v2067, 0
    %v2138 = vsel %vm144, %v2068, 0
    %v2141 = vsel %vm144, %v2069, 0
    %v2144 = vsel %vm144, %v2070, 0
    %v2147 = vsel %vm144, %v2071, 0
    %v2150 = vsel %vm144, %v2072, 0
    %v2153 = vsel %vm144, %v2073, 0
    %v2156 = vsel %vm144, %v2074, 0
    %v2159 = vsel %vm144, %v2075, 0
    %v2162 = vsel %vm144, %v2076, 0
    %v2165 = vsel %vm144, %v2077, 0
    %v2168 = vsel %vm144, %v2078, 0
    %v2171 = vsel %vm144, %v2079, 0
    %v2174 = vsel %vm144, %v2080, 0
    %v2177 = vsel %vm144, %v2081, 0
    %v2180 = vsel %vm144, %v2082, 0
    %v2183 = vsel %vm144, %v2083, 0
    %v2186 = vsel %vm144, %v2084, 0
    %v2189 = vsel %vm144, %v2085, 0
    %v2192 = vsel %vm144, %v2086, 0
    %v2195 = vsel %vm144, %v2087, 0
    %v2198 = vsel %vm144, %v2088, 0
    %v2201 = vsel %vm144, %v2089, 0
    %v2204 = vsel %vm144, %v2090, 0
    %v2207 = vsel %vm144, %v2091, 0
    %v2210 = vsel %vm144, %v2092, 0
    %v2213 = vsel %vm144, %v2093, 0
    %v2216 = vsel %vm144, %v2094, 0
    %v2219 = vsel %vm144, %v2095, 0
    %v2222 = vsel %vm144, %v2096, 0
    %v2225 = vsel %vm144, %v2097, 0
    %v2228 = vsel %vm144, %v2098, 0
    %v2231 = vsel %vm144, %v2099, 0
    %v2234 = vsel %vm144, %v2100, 0
    %v2237 = vsel %vm144, %v2101, 0
    %v2240 = vsel %vm144, %v2102, 0
    %v2243 = vsel %vm144, %v2103, 0
    %v2246 = vsel %vm144, %v2104, 0
    %v2249 = vsel %vm144, %v2105, 0
    %v2252 = vsel %vm144, %v2106, 0
    %v2255 = vsel %vm144, %v2107, 0
    %v2258 = vsel %vm144, %v2108, 0
    %v2261 = vsel %vm144, %v2109, 0
    %v2264 = vsel %vm144, %v2110, 0
    %v2267 = vsel %vm144, %v2111, 0
    %v2270 = vsel %vm144, %v2112, 0
    %2272 = vmatprep.subr.mxu0 0.0
    %2273 = vmatpush1.msra.mxu0 0.0
    %2274 = vmatprep.subr.mxu0 0.0
    %2275 = vmatpush1.msra.mxu0 0.0
    %2276 = vmatprep.subr.mxu0 0.0
    %2277 = vmatpush1.msra.mxu0 0.0
    %2278 = vmatprep.subr.mxu0 0.0
    %2279 = vmatpush1.msra.mxu0 0.0
    %2280 = vmatprep.subr.mxu0 0.0
    %2281 = vmatpush1.msra.mxu0 0.0
    %2282 = vmatprep.subr.mxu0 0.0
    %2283 = vmatpush1.msra.mxu0 0.0
    %2284 = vmatprep.subr.mxu0 0.0
    %2285 = vmatpush1.msra.mxu0 0.0
    %2286 = vmatprep.subr.mxu0 0.0
    %2287 = vmatpush1.msra.mxu0 0.0
    %2288 = vmatprep.subr.mxu0 0.0
    %2289 = vmatpush1.msra.mxu0 0.0
    %2290 = vmatprep.subr.mxu0 0.0
    %2291 = vmatpush1.msra.mxu0 0.0
    %2292 = vmatprep.subr.mxu0 0.0
    %2293 = vmatpush1.msra.mxu0 0.0
    %2294 = vmatprep.subr.mxu0 0.0
    %2295 = vmatpush1.msra.mxu0 0.0
    %2296 = vmatprep.subr.mxu0 0.0
    %2297 = vmatpush1.msra.mxu0 %v2116
    %2298 = vmatprep.subr.mxu0 0.0
    %2299 = vmatpush1.msra.mxu0 %v2115
    %2300 = vmatprep.subr.mxu0 0.0
    %2301 = vmatpush1.msra.mxu0 %v2114
    %2302 = vmatprep.subr.mxu0 0.0
    %2303 = vmatpush1.msra.mxu0 %v2113
    %2304 = vmatprep.subr.mxu0 0.0
    %2305 = vmatpush2.msra.mxu0 0.0
    %2306 = vmatprep.subr.mxu0 0.0
    %2307 = vmatpush2.msra.mxu0 0.0
    %2308 = vmatprep.subr.mxu0 0.0
    %2309 = vmatpush2.msra.mxu0 0.0
    %2310 = vmatprep.subr.mxu0 0.0
    %2311 = vmatpush2.msra.mxu0 0.0
    %2312 = vmatprep.subr.mxu0 0.0
    %2313 = vmatpush2.msra.mxu0 0.0
    %2314 = vmatprep.subr.mxu0 0.0
    %2315 = vmatpush2.msra.mxu0 0.0
    %2316 = vmatprep.subr.mxu0 0.0
    %2317 = vmatpush2.msra.mxu0 0.0
    %2318 = vmatprep.subr.mxu0 0.0
    %2319 = vmatpush2.msra.mxu0 0.0
    %2320 = vmatprep.subr.mxu0 0.0
    %2321 = vmatpush2.msra.mxu0 0.0
    %2322 = vmatprep.subr.mxu0 0.0
    %2323 = vmatpush2.msra.mxu0 0.0
    %2324 = vmatprep.subr.mxu0 0.0
    %2325 = vmatpush2.msra.mxu0 0.0
    %2326 = vmatprep.subr.mxu0 0.0
    %2327 = vmatpush2.msra.mxu0 0.0
    %2328 = vmatprep.subr.mxu0 0.0
    %2329 = vmatpush2.msra.mxu0 0.0
    %2330 = vmatprep.subr.mxu0 0.0
    %2331 = vmatpush2.msra.mxu0 0.0
    %2332 = vmatprep.subr.mxu0 0.0
    %2333 = vmatpush2.msra.mxu0 0.0
    %2334 = vmatprep.subr.mxu0 0.0
    %2335 = vmatpush2.msra.mxu0 0.0
    %2336 = vmatprep.mubr.f32.mxu0 0.0
    %2337 = vmatmul.mubr.f32.gmra.mxu0 %v2123
    %v2338 = vpop.f32.mrf.mxu0
    %v2339 = vadd.f32 %v2121, %v2338
    %v2340 = vpop.f32.mrf.mxu0
    %2341 = vmatprep.mubr.f32.mxu0 0.0
    %2342 = vmatmul.mubr.f32.gmra.mxu0 %v2126
    %v2343 = vpop.f32.mrf.mxu0
    %v2344 = vadd.f32 %v2121, %v2343
    %v2345 = vpop.f32.mrf.mxu0
    %2346 = vmatprep.mubr.f32.mxu0 0.0
    %2347 = vmatmul.mubr.f32.gmra.mxu0 %v2129
    %v2348 = vpop.f32.mrf.mxu0
    %v2349 = vadd.f32 %v2121, %v2348
    %v2350 = vpop.f32.mrf.mxu0
    %2351 = vmatprep.mubr.f32.mxu0 0.0
    %2352 = vmatmul.mubr.f32.gmra.mxu0 %v2132
    %v2353 = vpop.f32.mrf.mxu0
    %v2354 = vadd.f32 %v2121, %v2353
    %v2355 = vpop.f32.mrf.mxu0
    %2356 = vmatprep.mubr.f32.mxu0 0.0
    %2357 = vmatmul.mubr.f32.gmra.mxu0 %v2135
    %v2358 = vpop.f32.mrf.mxu0
    %v2359 = vadd.f32 %v2121, %v2358
    %v2360 = vpop.f32.mrf.mxu0
    %2361 = vmatprep.mubr.f32.mxu0 0.0
    %2362 = vmatmul.mubr.f32.gmra.mxu0 %v2138
    %v2363 = vpop.f32.mrf.mxu0
    %v2364 = vadd.f32 %v2121, %v2363
    %v2365 = vpop.f32.mrf.mxu0
    %2366 = vmatprep.mubr.f32.mxu0 0.0
    %2367 = vmatmul.mubr.f32.gmra.mxu0 %v2141
    %v2368 = vpop.f32.mrf.mxu0
    %v2369 = vadd.f32 %v2121, %v2368
    %v2370 = vpop.f32.mrf.mxu0
    %2371 = vmatprep.mubr.f32.mxu0 0.0
    %2372 = vmatmul.mubr.f32.gmra.mxu0 %v2144
    %v2373 = vpop.f32.mrf.mxu0
    %v2374 = vadd.f32 %v2121, %v2373
    %v2375 = vpop.f32.mrf.mxu0
    %2376 = vmatprep.mubr.f32.mxu0 0.0
    %2377 = vmatmul.mubr.f32.gmra.mxu0 %v2147
    %v2378 = vpop.f32.mrf.mxu0
    %v2379 = vadd.f32 %v2121, %v2378
    %v2380 = vpop.f32.mrf.mxu0
    %2381 = vmatprep.mubr.f32.mxu0 0.0
    %2382 = vmatmul.mubr.f32.gmra.mxu0 %v2150
    %v2383 = vpop.f32.mrf.mxu0
    %v2384 = vadd.f32 %v2121, %v2383
    %v2385 = vpop.f32.mrf.mxu0
    %2386 = vmatprep.mubr.f32.mxu0 0.0
    %2387 = vmatmul.mubr.f32.gmra.mxu0 %v2153
    %v2388 = vpop.f32.mrf.mxu0
    %v2389 = vadd.f32 %v2121, %v2388
    %v2390 = vpop.f32.mrf.mxu0
    %2391 = vmatprep.mubr.f32.mxu0 0.0
    %2392 = vmatmul.mubr.f32.gmra.mxu0 %v2156
    %v2393 = vpop.f32.mrf.mxu0
    %v2394 = vadd.f32 %v2121, %v2393
    %v2395 = vpop.f32.mrf.mxu0
    %2396 = vmatprep.mubr.f32.mxu0 0.0
    %2397 = vmatmul.mubr.f32.gmra.mxu0 %v2159
    %v2398 = vpop.f32.mrf.mxu0
    %v2399 = vadd.f32 %v2121, %v2398
    %v2400 = vpop.f32.mrf.mxu0
    %2401 = vmatprep.mubr.f32.mxu0 0.0
    %2402 = vmatmul.mubr.f32.gmra.mxu0 %v2162
    %v2403 = vpop.f32.mrf.mxu0
    %v2404 = vadd.f32 %v2121, %v2403
    %v2405 = vpop.f32.mrf.mxu0
    %2406 = vmatprep.mubr.f32.mxu0 0.0
    %2407 = vmatmul.mubr.f32.gmra.mxu0 %v2165
    %v2408 = vpop.f32.mrf.mxu0
    %v2409 = vadd.f32 %v2121, %v2408
    %v2410 = vpop.f32.mrf.mxu0
    %2411 = vmatprep.mubr.f32.mxu0 0.0
    %2412 = vmatmul.mubr.f32.gmra.mxu0 %v2168
    %v2413 = vpop.f32.mrf.mxu0
    %v2414 = vadd.f32 %v2121, %v2413
    %v2415 = vpop.f32.mrf.mxu0
    %2416 = vmatprep.mubr.f32.mxu0 0.0
    %2417 = vmatmul.mubr.f32.gmra.mxu0 %v2171
    %v2418 = vpop.f32.mrf.mxu0
    %v2419 = vadd.f32 %v2121, %v2418
    %v2420 = vpop.f32.mrf.mxu0
    %2421 = vmatprep.mubr.f32.mxu0 0.0
    %2422 = vmatmul.mubr.f32.gmra.mxu0 %v2174
    %v2423 = vpop.f32.mrf.mxu0
    %v2424 = vadd.f32 %v2121, %v2423
    %v2425 = vpop.f32.mrf.mxu0
    %2426 = vmatprep.mubr.f32.mxu0 0.0
    %2427 = vmatmul.mubr.f32.gmra.mxu0 %v2177
    %v2428 = vpop.f32.mrf.mxu0
    %v2429 = vadd.f32 %v2121, %v2428
    %v2430 = vpop.f32.mrf.mxu0
    %2431 = vmatprep.mubr.f32.mxu0 0.0
    %2432 = vmatmul.mubr.f32.gmra.mxu0 %v2180
    %v2433 = vpop.f32.mrf.mxu0
    %v2434 = vadd.f32 %v2121, %v2433
    %v2435 = vpop.f32.mrf.mxu0
    %2436 = vmatprep.mubr.f32.mxu0 0.0
    %2437 = vmatmul.mubr.f32.gmra.mxu0 %v2183
    %v2438 = vpop.f32.mrf.mxu0
    %v2439 = vadd.f32 %v2121, %v2438
    %v2440 = vpop.f32.mrf.mxu0
    %2441 = vmatprep.mubr.f32.mxu0 0.0
    %2442 = vmatmul.mubr.f32.gmra.mxu0 %v2186
    %v2443 = vpop.f32.mrf.mxu0
    %v2444 = vadd.f32 %v2121, %v2443
    %v2445 = vpop.f32.mrf.mxu0
    %2446 = vmatprep.mubr.f32.mxu0 0.0
    %2447 = vmatmul.mubr.f32.gmra.mxu0 %v2189
    %v2448 = vpop.f32.mrf.mxu0
    %v2449 = vadd.f32 %v2121, %v2448
    %v2450 = vpop.f32.mrf.mxu0
    %2451 = vmatprep.mubr.f32.mxu0 0.0
    %2452 = vmatmul.mubr.f32.gmra.mxu0 %v2192
    %v2453 = vpop.f32.mrf.mxu0
    %v2454 = vadd.f32 %v2121, %v2453
    %v2455 = vpop.f32.mrf.mxu0
    %2456 = vmatprep.mubr.f32.mxu0 0.0
    %2457 = vmatmul.mubr.f32.gmra.mxu0 %v2195
    %v2458 = vpop.f32.mrf.mxu0
    %v2459 = vadd.f32 %v2121, %v2458
    %v2460 = vpop.f32.mrf.mxu0
    %2461 = vmatprep.mubr.f32.mxu0 0.0
    %2462 = vmatmul.mubr.f32.gmra.mxu0 %v2198
    %v2463 = vpop.f32.mrf.mxu0
    %v2464 = vadd.f32 %v2121, %v2463
    %v2465 = vpop.f32.mrf.mxu0
    %2466 = vmatprep.mubr.f32.mxu0 0.0
    %2467 = vmatmul.mubr.f32.gmra.mxu0 %v2201
    %v2468 = vpop.f32.mrf.mxu0
    %v2469 = vadd.f32 %v2121, %v2468
    %v2470 = vpop.f32.mrf.mxu0
    %2471 = vmatprep.mubr.f32.mxu0 0.0
    %2472 = vmatmul.mubr.f32.gmra.mxu0 %v2204
    %v2473 = vpop.f32.mrf.mxu0
    %v2474 = vadd.f32 %v2121, %v2473
    %v2475 = vpop.f32.mrf.mxu0
    %2476 = vmatprep.mubr.f32.mxu0 0.0
    %2477 = vmatmul.mubr.f32.gmra.mxu0 %v2207
    %v2478 = vpop.f32.mrf.mxu0
    %v2479 = vadd.f32 %v2121, %v2478
    %v2480 = vpop.f32.mrf.mxu0
    %2481 = vmatprep.mubr.f32.mxu0 0.0
    %2482 = vmatmul.mubr.f32.gmra.mxu0 %v2210
    %v2483 = vpop.f32.mrf.mxu0
    %v2484 = vadd.f32 %v2121, %v2483
    %v2485 = vpop.f32.mrf.mxu0
    %2486 = vmatprep.mubr.f32.mxu0 0.0
    %2487 = vmatmul.mubr.f32.gmra.mxu0 %v2213
    %v2488 = vpop.f32.mrf.mxu0
    %v2489 = vadd.f32 %v2121, %v2488
    %v2490 = vpop.f32.mrf.mxu0
    %2491 = vmatprep.mubr.f32.mxu0 0.0
    %2492 = vmatmul.mubr.f32.gmra.mxu0 %v2216
    %v2493 = vpop.f32.mrf.mxu0
    %v2494 = vadd.f32 %v2121, %v2493
    %v2495 = vpop.f32.mrf.mxu0
    %2496 = vmatprep.mubr.f32.mxu0 0.0
    %2497 = vmatmul.mubr.f32.gmra.mxu0 %v2219
    %v2498 = vpop.f32.mrf.mxu0
    %v2499 = vadd.f32 %v2121, %v2498
    %v2500 = vpop.f32.mrf.mxu0
    %2501 = vmatprep.mubr.f32.mxu0 0.0
    %2502 = vmatmul.mubr.f32.gmra.mxu0 %v2222
    %v2503 = vpop.f32.mrf.mxu0
    %v2504 = vadd.f32 %v2121, %v2503
    %v2505 = vpop.f32.mrf.mxu0
    %2506 = vmatprep.mubr.f32.mxu0 0.0
    %2507 = vmatmul.mubr.f32.gmra.mxu0 %v2225
    %v2508 = vpop.f32.mrf.mxu0
    %v2509 = vadd.f32 %v2121, %v2508
    %v2510 = vpop.f32.mrf.mxu0
    %2511 = vmatprep.mubr.f32.mxu0 0.0
    %2512 = vmatmul.mubr.f32.gmra.mxu0 %v2228
    %v2513 = vpop.f32.mrf.mxu0
    %v2514 = vadd.f32 %v2121, %v2513
    %v2515 = vpop.f32.mrf.mxu0
    %2516 = vmatprep.mubr.f32.mxu0 0.0
    %2517 = vmatmul.mubr.f32.gmra.mxu0 %v2231
    %v2518 = vpop.f32.mrf.mxu0
    %v2519 = vadd.f32 %v2121, %v2518
    %v2520 = vpop.f32.mrf.mxu0
    %2521 = vmatprep.mubr.f32.mxu0 0.0
    %2522 = vmatmul.mubr.f32.gmra.mxu0 %v2234
    %v2523 = vpop.f32.mrf.mxu0
    %v2524 = vadd.f32 %v2121, %v2523
    %v2525 = vpop.f32.mrf.mxu0
    %2526 = vmatprep.mubr.f32.mxu0 0.0
    %2527 = vmatmul.mubr.f32.gmra.mxu0 %v2237
    %v2528 = vpop.f32.mrf.mxu0
    %v2529 = vadd.f32 %v2121, %v2528
    %v2530 = vpop.f32.mrf.mxu0
    %2531 = vmatprep.mubr.f32.mxu0 0.0
    %2532 = vmatmul.mubr.f32.gmra.mxu0 %v2240
    %v2533 = vpop.f32.mrf.mxu0
    %v2534 = vadd.f32 %v2121, %v2533
    %v2535 = vpop.f32.mrf.mxu0
    %2536 = vmatprep.mubr.f32.mxu0 0.0
    %2537 = vmatmul.mubr.f32.gmra.mxu0 %v2243
    %v2538 = vpop.f32.mrf.mxu0
    %v2539 = vadd.f32 %v2121, %v2538
    %v2540 = vpop.f32.mrf.mxu0
    %2541 = vmatprep.mubr.f32.mxu0 0.0
    %2542 = vmatmul.mubr.f32.gmra.mxu0 %v2246
    %v2543 = vpop.f32.mrf.mxu0
    %v2544 = vadd.f32 %v2121, %v2543
    %v2545 = vpop.f32.mrf.mxu0
    %2546 = vmatprep.mubr.f32.mxu0 0.0
    %2547 = vmatmul.mubr.f32.gmra.mxu0 %v2249
    %v2548 = vpop.f32.mrf.mxu0
    %v2549 = vadd.f32 %v2121, %v2548
    %v2550 = vpop.f32.mrf.mxu0
    %2551 = vmatprep.mubr.f32.mxu0 0.0
    %2552 = vmatmul.mubr.f32.gmra.mxu0 %v2252
    %v2553 = vpop.f32.mrf.mxu0
    %v2554 = vadd.f32 %v2121, %v2553
    %v2555 = vpop.f32.mrf.mxu0
    %2556 = vmatprep.mubr.f32.mxu0 0.0
    %2557 = vmatmul.mubr.f32.gmra.mxu0 %v2255
    %v2558 = vpop.f32.mrf.mxu0
    %v2559 = vadd.f32 %v2121, %v2558
    %v2560 = vpop.f32.mrf.mxu0
    %2561 = vmatprep.mubr.f32.mxu0 0.0
    %2562 = vmatmul.mubr.f32.gmra.mxu0 %v2258
    %v2563 = vpop.f32.mrf.mxu0
    %v2564 = vadd.f32 %v2121, %v2563
    %v2565 = vpop.f32.mrf.mxu0
    %2566 = vmatprep.mubr.f32.mxu0 0.0
    %2567 = vmatmul.mubr.f32.gmra.mxu0 %v2261
    %v2568 = vpop.f32.mrf.mxu0
    %v2569 = vadd.f32 %v2121, %v2568
    %v2570 = vpop.f32.mrf.mxu0
    %2571 = vmatprep.mubr.f32.mxu0 0.0
    %2572 = vmatmul.mubr.f32.gmra.mxu0 %v2264
    %v2573 = vpop.f32.mrf.mxu0
    %v2574 = vadd.f32 %v2121, %v2573
    %v2575 = vpop.f32.mrf.mxu0
    %2576 = vmatprep.mubr.f32.mxu0 0.0
    %2577 = vmatmul.mubr.f32.gmra.mxu0 %v2267
    %v2578 = vpop.f32.mrf.mxu0
    %v2579 = vadd.f32 %v2121, %v2578
    %v2580 = vpop.f32.mrf.mxu0
    %2581 = vmatprep.mubr.f32.mxu0 0.0
    %2582 = vmatmul.mubr.f32.gmra.mxu0 %v2270
    %v2583 = vpop.f32.mrf.mxu0
    %v2584 = vadd.f32 %v2121, %v2583
    %v2585 = vpop.f32.mrf.mxu0
    %2586 = vdwg.mxu0
    %v2587 = vmax.f32 %v2339, 0.0
    %v2588 = vmax.f32 %v2344, 0.0
    %v2589 = vmax.f32 %v2349, 0.0
    %v2590 = vmax.f32 %v2354, 0.0
    %v2591 = vmax.f32 %v2359, 0.0
    %v2592 = vmax.f32 %v2364, 0.0
    %v2593 = vmax.f32 %v2369, 0.0
    %v2594 = vmax.f32 %v2374, 0.0
    %v2595 = vmax.f32 %v2379, 0.0
    %v2596 = vmax.f32 %v2384, 0.0
    %v2597 = vmax.f32 %v2389, 0.0
    %v2598 = vmax.f32 %v2394, 0.0
    %v2599 = vmax.f32 %v2399, 0.0
    %v2600 = vmax.f32 %v2404, 0.0
    %v2601 = vmax.f32 %v2409, 0.0
    %v2602 = vmax.f32 %v2414, 0.0
    %v2603 = vmax.f32 %v2419, 0.0
    %v2604 = vmax.f32 %v2424, 0.0
    %v2605 = vmax.f32 %v2429, 0.0
    %v2606 = vmax.f32 %v2434, 0.0
    %v2607 = vmax.f32 %v2439, 0.0
    %v2608 = vmax.f32 %v2444, 0.0
    %v2609 = vmax.f32 %v2449, 0.0
    %v2610 = vmax.f32 %v2454, 0.0
    %v2611 = vmax.f32 %v2459, 0.0
    %v2612 = vmax.f32 %v2464, 0.0
    %v2613 = vmax.f32 %v2469, 0.0
    %v2614 = vmax.f32 %v2474, 0.0
    %v2615 = vmax.f32 %v2479, 0.0
    %v2616 = vmax.f32 %v2484, 0.0
    %v2617 = vmax.f32 %v2489, 0.0
    %v2618 = vmax.f32 %v2494, 0.0
    %v2619 = vmax.f32 %v2499, 0.0
    %v2620 = vmax.f32 %v2504, 0.0
    %v2621 = vmax.f32 %v2509, 0.0
    %v2622 = vmax.f32 %v2514, 0.0
    %v2623 = vmax.f32 %v2519, 0.0
    %v2624 = vmax.f32 %v2524, 0.0
    %v2625 = vmax.f32 %v2529, 0.0
    %v2626 = vmax.f32 %v2534, 0.0
    %v2627 = vmax.f32 %v2539, 0.0
    %v2628 = vmax.f32 %v2544, 0.0
    %v2629 = vmax.f32 %v2549, 0.0
    %v2630 = vmax.f32 %v2554, 0.0
    %v2631 = vmax.f32 %v2559, 0.0
    %v2632 = vmax.f32 %v2564, 0.0
    %v2633 = vmax.f32 %v2569, 0.0
    %v2634 = vmax.f32 %v2574, 0.0
    %v2635 = vmax.f32 %v2579, 0.0
    %v2636 = vmax.f32 %v2584, 0.0
    %v2637 = vld [vmem:[#allocation5 + $0xb8] sm:$0xff]
    %v2638 = vld [vmem:[#allocation5 + $0xc0] sm:$0xff]
    %v2639 = vld [vmem:[#allocation5 + $0xc8] sm:$0xff]
    %v2640 = vld [vmem:[#allocation5 + $0xd0] sm:$0xff]
    %v2641 = vld [vmem:[#allocation7 + $0x7] sm:$0x1]
    %v2642 = vlaneseq
    %v2643 = vshrl.u32 %v2642, 7
    %v2644 = vsub.s32 0, %v2643
    %v2645 = vrot.slane %v2641, %v2644
    %v2647 = vsel %vm144, %v2587, 0
    %v2650 = vsel %vm144, %v2588, 0
    %v2653 = vsel %vm144, %v2589, 0
    %v2656 = vsel %vm144, %v2590, 0
    %v2659 = vsel %vm144, %v2591, 0
    %v2662 = vsel %vm144, %v2592, 0
    %v2665 = vsel %vm144, %v2593, 0
    %v2668 = vsel %vm144, %v2594, 0
    %v2671 = vsel %vm144, %v2595, 0
    %v2674 = vsel %vm144, %v2596, 0
    %v2677 = vsel %vm144, %v2597, 0
    %v2680 = vsel %vm144, %v2598, 0
    %v2683 = vsel %vm144, %v2599, 0
    %v2686 = vsel %vm144, %v2600, 0
    %v2689 = vsel %vm144, %v2601, 0
    %v2692 = vsel %vm144, %v2602, 0
    %v2695 = vsel %vm144, %v2603, 0
    %v2698 = vsel %vm144, %v2604, 0
    %v2701 = vsel %vm144, %v2605, 0
    %v2704 = vsel %vm144, %v2606, 0
    %v2707 = vsel %vm144, %v2607, 0
    %v2710 = vsel %vm144, %v2608, 0
    %v2713 = vsel %vm144, %v2609, 0
    %v2716 = vsel %vm144, %v2610, 0
    %v2719 = vsel %vm144, %v2611, 0
    %v2722 = vsel %vm144, %v2612, 0
    %v2725 = vsel %vm144, %v2613, 0
    %v2728 = vsel %vm144, %v2614, 0
    %v2731 = vsel %vm144, %v2615, 0
    %v2734 = vsel %vm144, %v2616, 0
    %v2737 = vsel %vm144, %v2617, 0
    %v2740 = vsel %vm144, %v2618, 0
    %v2743 = vsel %vm144, %v2619, 0
    %v2746 = vsel %vm144, %v2620, 0
    %v2749 = vsel %vm144, %v2621, 0
    %v2752 = vsel %vm144, %v2622, 0
    %v2755 = vsel %vm144, %v2623, 0
    %v2758 = vsel %vm144, %v2624, 0
    %v2761 = vsel %vm144, %v2625, 0
    %v2764 = vsel %vm144, %v2626, 0
    %v2767 = vsel %vm144, %v2627, 0
    %v2770 = vsel %vm144, %v2628, 0
    %v2773 = vsel %vm144, %v2629, 0
    %v2776 = vsel %vm144, %v2630, 0
    %v2779 = vsel %vm144, %v2631, 0
    %v2782 = vsel %vm144, %v2632, 0
    %v2785 = vsel %vm144, %v2633, 0
    %v2788 = vsel %vm144, %v2634, 0
    %v2791 = vsel %vm144, %v2635, 0
    %v2794 = vsel %vm144, %v2636, 0
    %2796 = vmatprep.subr.mxu0 0.0
    %2797 = vmatpush1.msra.mxu0 0.0
    %2798 = vmatprep.subr.mxu0 0.0
    %2799 = vmatpush1.msra.mxu0 0.0
    %2800 = vmatprep.subr.mxu0 0.0
    %2801 = vmatpush1.msra.mxu0 0.0
    %2802 = vmatprep.subr.mxu0 0.0
    %2803 = vmatpush1.msra.mxu0 0.0
    %2804 = vmatprep.subr.mxu0 0.0
    %2805 = vmatpush1.msra.mxu0 0.0
    %2806 = vmatprep.subr.mxu0 0.0
    %2807 = vmatpush1.msra.mxu0 0.0
    %2808 = vmatprep.subr.mxu0 0.0
    %2809 = vmatpush1.msra.mxu0 0.0
    %2810 = vmatprep.subr.mxu0 0.0
    %2811 = vmatpush1.msra.mxu0 0.0
    %2812 = vmatprep.subr.mxu0 0.0
    %2813 = vmatpush1.msra.mxu0 0.0
    %2814 = vmatprep.subr.mxu0 0.0
    %2815 = vmatpush1.msra.mxu0 0.0
    %2816 = vmatprep.subr.mxu0 0.0
    %2817 = vmatpush1.msra.mxu0 0.0
    %2818 = vmatprep.subr.mxu0 0.0
    %2819 = vmatpush1.msra.mxu0 0.0
    %2820 = vmatprep.subr.mxu0 0.0
    %2821 = vmatpush1.msra.mxu0 %v2640
    %2822 = vmatprep.subr.mxu0 0.0
    %2823 = vmatpush1.msra.mxu0 %v2639
    %2824 = vmatprep.subr.mxu0 0.0
    %2825 = vmatpush1.msra.mxu0 %v2638
    %2826 = vmatprep.subr.mxu0 0.0
    %2827 = vmatpush1.msra.mxu0 %v2637
    %2828 = vmatprep.subr.mxu0 0.0
    %2829 = vmatpush2.msra.mxu0 0.0
    %2830 = vmatprep.subr.mxu0 0.0
    %2831 = vmatpush2.msra.mxu0 0.0
    %2832 = vmatprep.subr.mxu0 0.0
    %2833 = vmatpush2.msra.mxu0 0.0
    %2834 = vmatprep.subr.mxu0 0.0
    %2835 = vmatpush2.msra.mxu0 0.0
    %2836 = vmatprep.subr.mxu0 0.0
    %2837 = vmatpush2.msra.mxu0 0.0
    %2838 = vmatprep.subr.mxu0 0.0
    %2839 = vmatpush2.msra.mxu0 0.0
    %2840 = vmatprep.subr.mxu0 0.0
    %2841 = vmatpush2.msra.mxu0 0.0
    %2842 = vmatprep.subr.mxu0 0.0
    %2843 = vmatpush2.msra.mxu0 0.0
    %2844 = vmatprep.subr.mxu0 0.0
    %2845 = vmatpush2.msra.mxu0 0.0
    %2846 = vmatprep.subr.mxu0 0.0
    %2847 = vmatpush2.msra.mxu0 0.0
    %2848 = vmatprep.subr.mxu0 0.0
    %2849 = vmatpush2.msra.mxu0 0.0
    %2850 = vmatprep.subr.mxu0 0.0
    %2851 = vmatpush2.msra.mxu0 0.0
    %2852 = vmatprep.subr.mxu0 0.0
    %2853 = vmatpush2.msra.mxu0 0.0
    %2854 = vmatprep.subr.mxu0 0.0
    %2855 = vmatpush2.msra.mxu0 0.0
    %2856 = vmatprep.subr.mxu0 0.0
    %2857 = vmatpush2.msra.mxu0 0.0
    %2858 = vmatprep.subr.mxu0 0.0
    %2859 = vmatpush2.msra.mxu0 0.0
    %2860 = vmatprep.mubr.f32.mxu0 0.0
    %2861 = vmatmul.mubr.f32.gmra.mxu0 %v2647
    %v2862 = vpop.f32.mrf.mxu0
    %v2863 = vadd.f32 %v2645, %v2862
    %v2864 = vpop.f32.mrf.mxu0
    %2865 = vmatprep.mubr.f32.mxu0 0.0
    %2866 = vmatmul.mubr.f32.gmra.mxu0 %v2650
    %v2867 = vpop.f32.mrf.mxu0
    %v2868 = vadd.f32 %v2645, %v2867
    %v2869 = vpop.f32.mrf.mxu0
    %2870 = vmatprep.mubr.f32.mxu0 0.0
    %2871 = vmatmul.mubr.f32.gmra.mxu0 %v2653
    %v2872 = vpop.f32.mrf.mxu0
    %v2873 = vadd.f32 %v2645, %v2872
    %v2874 = vpop.f32.mrf.mxu0
    %2875 = vmatprep.mubr.f32.mxu0 0.0
    %2876 = vmatmul.mubr.f32.gmra.mxu0 %v2656
    %v2877 = vpop.f32.mrf.mxu0
    %v2878 = vadd.f32 %v2645, %v2877
    %v2879 = vpop.f32.mrf.mxu0
    %2880 = vmatprep.mubr.f32.mxu0 0.0
    %2881 = vmatmul.mubr.f32.gmra.mxu0 %v2659
    %v2882 = vpop.f32.mrf.mxu0
    %v2883 = vadd.f32 %v2645, %v2882
    %v2884 = vpop.f32.mrf.mxu0
    %2885 = vmatprep.mubr.f32.mxu0 0.0
    %2886 = vmatmul.mubr.f32.gmra.mxu0 %v2662
    %v2887 = vpop.f32.mrf.mxu0
    %v2888 = vadd.f32 %v2645, %v2887
    %v2889 = vpop.f32.mrf.mxu0
    %2890 = vmatprep.mubr.f32.mxu0 0.0
    %2891 = vmatmul.mubr.f32.gmra.mxu0 %v2665
    %v2892 = vpop.f32.mrf.mxu0
    %v2893 = vadd.f32 %v2645, %v2892
    %v2894 = vpop.f32.mrf.mxu0
    %2895 = vmatprep.mubr.f32.mxu0 0.0
    %2896 = vmatmul.mubr.f32.gmra.mxu0 %v2668
    %v2897 = vpop.f32.mrf.mxu0
    %v2898 = vadd.f32 %v2645, %v2897
    %v2899 = vpop.f32.mrf.mxu0
    %2900 = vmatprep.mubr.f32.mxu0 0.0
    %2901 = vmatmul.mubr.f32.gmra.mxu0 %v2671
    %v2902 = vpop.f32.mrf.mxu0
    %v2903 = vadd.f32 %v2645, %v2902
    %v2904 = vpop.f32.mrf.mxu0
    %2905 = vmatprep.mubr.f32.mxu0 0.0
    %2906 = vmatmul.mubr.f32.gmra.mxu0 %v2674
    %v2907 = vpop.f32.mrf.mxu0
    %v2908 = vadd.f32 %v2645, %v2907
    %v2909 = vpop.f32.mrf.mxu0
    %2910 = vmatprep.mubr.f32.mxu0 0.0
    %2911 = vmatmul.mubr.f32.gmra.mxu0 %v2677
    %v2912 = vpop.f32.mrf.mxu0
    %v2913 = vadd.f32 %v2645, %v2912
    %v2914 = vpop.f32.mrf.mxu0
    %2915 = vmatprep.mubr.f32.mxu0 0.0
    %2916 = vmatmul.mubr.f32.gmra.mxu0 %v2680
    %v2917 = vpop.f32.mrf.mxu0
    %v2918 = vadd.f32 %v2645, %v2917
    %v2919 = vpop.f32.mrf.mxu0
    %2920 = vmatprep.mubr.f32.mxu0 0.0
    %2921 = vmatmul.mubr.f32.gmra.mxu0 %v2683
    %v2922 = vpop.f32.mrf.mxu0
    %v2923 = vadd.f32 %v2645, %v2922
    %v2924 = vpop.f32.mrf.mxu0
    %2925 = vmatprep.mubr.f32.mxu0 0.0
    %2926 = vmatmul.mubr.f32.gmra.mxu0 %v2686
    %v2927 = vpop.f32.mrf.mxu0
    %v2928 = vadd.f32 %v2645, %v2927
    %v2929 = vpop.f32.mrf.mxu0
    %2930 = vmatprep.mubr.f32.mxu0 0.0
    %2931 = vmatmul.mubr.f32.gmra.mxu0 %v2689
    %v2932 = vpop.f32.mrf.mxu0
    %v2933 = vadd.f32 %v2645, %v2932
    %v2934 = vpop.f32.mrf.mxu0
    %2935 = vmatprep.mubr.f32.mxu0 0.0
    %2936 = vmatmul.mubr.f32.gmra.mxu0 %v2692
    %v2937 = vpop.f32.mrf.mxu0
    %v2938 = vadd.f32 %v2645, %v2937
    %v2939 = vpop.f32.mrf.mxu0
    %2940 = vmatprep.mubr.f32.mxu0 0.0
    %2941 = vmatmul.mubr.f32.gmra.mxu0 %v2695
    %v2942 = vpop.f32.mrf.mxu0
    %v2943 = vadd.f32 %v2645, %v2942
    %v2944 = vpop.f32.mrf.mxu0
    %2945 = vmatprep.mubr.f32.mxu0 0.0
    %2946 = vmatmul.mubr.f32.gmra.mxu0 %v2698
    %v2947 = vpop.f32.mrf.mxu0
    %v2948 = vadd.f32 %v2645, %v2947
    %v2949 = vpop.f32.mrf.mxu0
    %2950 = vmatprep.mubr.f32.mxu0 0.0
    %2951 = vmatmul.mubr.f32.gmra.mxu0 %v2701
    %v2952 = vpop.f32.mrf.mxu0
    %v2953 = vadd.f32 %v2645, %v2952
    %v2954 = vpop.f32.mrf.mxu0
    %2955 = vmatprep.mubr.f32.mxu0 0.0
    %2956 = vmatmul.mubr.f32.gmra.mxu0 %v2704
    %v2957 = vpop.f32.mrf.mxu0
    %v2958 = vadd.f32 %v2645, %v2957
    %v2959 = vpop.f32.mrf.mxu0
    %2960 = vmatprep.mubr.f32.mxu0 0.0
    %2961 = vmatmul.mubr.f32.gmra.mxu0 %v2707
    %v2962 = vpop.f32.mrf.mxu0
    %v2963 = vadd.f32 %v2645, %v2962
    %v2964 = vpop.f32.mrf.mxu0
    %2965 = vmatprep.mubr.f32.mxu0 0.0
    %2966 = vmatmul.mubr.f32.gmra.mxu0 %v2710
    %v2967 = vpop.f32.mrf.mxu0
    %v2968 = vadd.f32 %v2645, %v2967
    %v2969 = vpop.f32.mrf.mxu0
    %2970 = vmatprep.mubr.f32.mxu0 0.0
    %2971 = vmatmul.mubr.f32.gmra.mxu0 %v2713
    %v2972 = vpop.f32.mrf.mxu0
    %v2973 = vadd.f32 %v2645, %v2972
    %v2974 = vpop.f32.mrf.mxu0
    %2975 = vmatprep.mubr.f32.mxu0 0.0
    %2976 = vmatmul.mubr.f32.gmra.mxu0 %v2716
    %v2977 = vpop.f32.mrf.mxu0
    %v2978 = vadd.f32 %v2645, %v2977
    %v2979 = vpop.f32.mrf.mxu0
    %2980 = vmatprep.mubr.f32.mxu0 0.0
    %2981 = vmatmul.mubr.f32.gmra.mxu0 %v2719
    %v2982 = vpop.f32.mrf.mxu0
    %v2983 = vadd.f32 %v2645, %v2982
    %v2984 = vpop.f32.mrf.mxu0
    %2985 = vmatprep.mubr.f32.mxu0 0.0
    %2986 = vmatmul.mubr.f32.gmra.mxu0 %v2722
    %v2987 = vpop.f32.mrf.mxu0
    %v2988 = vadd.f32 %v2645, %v2987
    %v2989 = vpop.f32.mrf.mxu0
    %2990 = vmatprep.mubr.f32.mxu0 0.0
    %2991 = vmatmul.mubr.f32.gmra.mxu0 %v2725
    %v2992 = vpop.f32.mrf.mxu0
    %v2993 = vadd.f32 %v2645, %v2992
    %v2994 = vpop.f32.mrf.mxu0
    %2995 = vmatprep.mubr.f32.mxu0 0.0
    %2996 = vmatmul.mubr.f32.gmra.mxu0 %v2728
    %v2997 = vpop.f32.mrf.mxu0
    %v2998 = vadd.f32 %v2645, %v2997
    %v2999 = vpop.f32.mrf.mxu0
    %3000 = vmatprep.mubr.f32.mxu0 0.0
    %3001 = vmatmul.mubr.f32.gmra.mxu0 %v2731
    %v3002 = vpop.f32.mrf.mxu0
    %v3003 = vadd.f32 %v2645, %v3002
    %v3004 = vpop.f32.mrf.mxu0
    %3005 = vmatprep.mubr.f32.mxu0 0.0
    %3006 = vmatmul.mubr.f32.gmra.mxu0 %v2734
    %v3007 = vpop.f32.mrf.mxu0
    %v3008 = vadd.f32 %v2645, %v3007
    %v3009 = vpop.f32.mrf.mxu0
    %3010 = vmatprep.mubr.f32.mxu0 0.0
    %3011 = vmatmul.mubr.f32.gmra.mxu0 %v2737
    %v3012 = vpop.f32.mrf.mxu0
    %v3013 = vadd.f32 %v2645, %v3012
    %v3014 = vpop.f32.mrf.mxu0
    %3015 = vmatprep.mubr.f32.mxu0 0.0
    %3016 = vmatmul.mubr.f32.gmra.mxu0 %v2740
    %v3017 = vpop.f32.mrf.mxu0
    %v3018 = vadd.f32 %v2645, %v3017
    %v3019 = vpop.f32.mrf.mxu0
    %3020 = vmatprep.mubr.f32.mxu0 0.0
    %3021 = vmatmul.mubr.f32.gmra.mxu0 %v2743
    %v3022 = vpop.f32.mrf.mxu0
    %v3023 = vadd.f32 %v2645, %v3022
    %v3024 = vpop.f32.mrf.mxu0
    %3025 = vmatprep.mubr.f32.mxu0 0.0
    %3026 = vmatmul.mubr.f32.gmra.mxu0 %v2746
    %v3027 = vpop.f32.mrf.mxu0
    %v3028 = vadd.f32 %v2645, %v3027
    %v3029 = vpop.f32.mrf.mxu0
    %3030 = vmatprep.mubr.f32.mxu0 0.0
    %3031 = vmatmul.mubr.f32.gmra.mxu0 %v2749
    %v3032 = vpop.f32.mrf.mxu0
    %v3033 = vadd.f32 %v2645, %v3032
    %v3034 = vpop.f32.mrf.mxu0
    %3035 = vmatprep.mubr.f32.mxu0 0.0
    %3036 = vmatmul.mubr.f32.gmra.mxu0 %v2752
    %v3037 = vpop.f32.mrf.mxu0
    %v3038 = vadd.f32 %v2645, %v3037
    %v3039 = vpop.f32.mrf.mxu0
    %3040 = vmatprep.mubr.f32.mxu0 0.0
    %3041 = vmatmul.mubr.f32.gmra.mxu0 %v2755
    %v3042 = vpop.f32.mrf.mxu0
    %v3043 = vadd.f32 %v2645, %v3042
    %v3044 = vpop.f32.mrf.mxu0
    %3045 = vmatprep.mubr.f32.mxu0 0.0
    %3046 = vmatmul.mubr.f32.gmra.mxu0 %v2758
    %v3047 = vpop.f32.mrf.mxu0
    %v3048 = vadd.f32 %v2645, %v3047
    %v3049 = vpop.f32.mrf.mxu0
    %3050 = vmatprep.mubr.f32.mxu0 0.0
    %3051 = vmatmul.mubr.f32.gmra.mxu0 %v2761
    %v3052 = vpop.f32.mrf.mxu0
    %v3053 = vadd.f32 %v2645, %v3052
    %v3054 = vpop.f32.mrf.mxu0
    %3055 = vmatprep.mubr.f32.mxu0 0.0
    %3056 = vmatmul.mubr.f32.gmra.mxu0 %v2764
    %v3057 = vpop.f32.mrf.mxu0
    %v3058 = vadd.f32 %v2645, %v3057
    %v3059 = vpop.f32.mrf.mxu0
    %3060 = vmatprep.mubr.f32.mxu0 0.0
    %3061 = vmatmul.mubr.f32.gmra.mxu0 %v2767
    %v3062 = vpop.f32.mrf.mxu0
    %v3063 = vadd.f32 %v2645, %v3062
    %v3064 = vpop.f32.mrf.mxu0
    %3065 = vmatprep.mubr.f32.mxu0 0.0
    %3066 = vmatmul.mubr.f32.gmra.mxu0 %v2770
    %v3067 = vpop.f32.mrf.mxu0
    %v3068 = vadd.f32 %v2645, %v3067
    %v3069 = vpop.f32.mrf.mxu0
    %3070 = vmatprep.mubr.f32.mxu0 0.0
    %3071 = vmatmul.mubr.f32.gmra.mxu0 %v2773
    %v3072 = vpop.f32.mrf.mxu0
    %v3073 = vadd.f32 %v2645, %v3072
    %v3074 = vpop.f32.mrf.mxu0
    %3075 = vmatprep.mubr.f32.mxu0 0.0
    %3076 = vmatmul.mubr.f32.gmra.mxu0 %v2776
    %v3077 = vpop.f32.mrf.mxu0
    %v3078 = vadd.f32 %v2645, %v3077
    %v3079 = vpop.f32.mrf.mxu0
    %3080 = vmatprep.mubr.f32.mxu0 0.0
    %3081 = vmatmul.mubr.f32.gmra.mxu0 %v2779
    %v3082 = vpop.f32.mrf.mxu0
    %v3083 = vadd.f32 %v2645, %v3082
    %v3084 = vpop.f32.mrf.mxu0
    %3085 = vmatprep.mubr.f32.mxu0 0.0
    %3086 = vmatmul.mubr.f32.gmra.mxu0 %v2782
    %v3087 = vpop.f32.mrf.mxu0
    %v3088 = vadd.f32 %v2645, %v3087
    %v3089 = vpop.f32.mrf.mxu0
    %3090 = vmatprep.mubr.f32.mxu0 0.0
    %3091 = vmatmul.mubr.f32.gmra.mxu0 %v2785
    %v3092 = vpop.f32.mrf.mxu0
    %v3093 = vadd.f32 %v2645, %v3092
    %v3094 = vpop.f32.mrf.mxu0
    %3095 = vmatprep.mubr.f32.mxu0 0.0
    %3096 = vmatmul.mubr.f32.gmra.mxu0 %v2788
    %v3097 = vpop.f32.mrf.mxu0
    %v3098 = vadd.f32 %v2645, %v3097
    %v3099 = vpop.f32.mrf.mxu0
    %3100 = vmatprep.mubr.f32.mxu0 0.0
    %3101 = vmatmul.mubr.f32.gmra.mxu0 %v2791
    %v3102 = vpop.f32.mrf.mxu0
    %v3103 = vadd.f32 %v2645, %v3102
    %v3104 = vpop.f32.mrf.mxu0
    %3105 = vmatprep.mubr.f32.mxu0 0.0
    %3106 = vmatmul.mubr.f32.gmra.mxu0 %v2794
    %v3107 = vpop.f32.mrf.mxu0
    %v3108 = vadd.f32 %v2645, %v3107
    %v3109 = vpop.f32.mrf.mxu0
    %3110 = vdwg.mxu0
    %3111 = vst [vmem:[#allocation8] sm:$0xff] %v2863
    %3112 = vst [vmem:[#allocation8 + $0x8] sm:$0xff] %v2868
    %3113 = vst [vmem:[#allocation8 + $0x10] sm:$0xff] %v2873
    %3114 = vst [vmem:[#allocation8 + $0x18] sm:$0xff] %v2878
    %3115 = vst [vmem:[#allocation8 + $0x20] sm:$0xff] %v2883
    %3116 = vst [vmem:[#allocation8 + $0x28] sm:$0xff] %v2888
    %3117 = vst [vmem:[#allocation8 + $0x30] sm:$0xff] %v2893
    %3118 = vst [vmem:[#allocation8 + $0x38] sm:$0xff] %v2898
    %3119 = vst [vmem:[#allocation8 + $0x40] sm:$0xff] %v2903
    %3120 = vst [vmem:[#allocation8 + $0x48] sm:$0xff] %v2908
    %3121 = vst [vmem:[#allocation8 + $0x50] sm:$0xff] %v2913
    %3122 = vst [vmem:[#allocation8 + $0x58] sm:$0xff] %v2918
    %3123 = vst [vmem:[#allocation8 + $0x60] sm:$0xff] %v2923
    %3124 = vst [vmem:[#allocation8 + $0x68] sm:$0xff] %v2928
    %3125 = vst [vmem:[#allocation8 + $0x70] sm:$0xff] %v2933
    %3126 = vst [vmem:[#allocation8 + $0x78] sm:$0xff] %v2938
    %3127 = vst [vmem:[#allocation8 + $0x80] sm:$0xff] %v2943
    %3128 = vst [vmem:[#allocation8 + $0x88] sm:$0xff] %v2948
    %3129 = vst [vmem:[#allocation8 + $0x90] sm:$0xff] %v2953
    %3130 = vst [vmem:[#allocation8 + $0x98] sm:$0xff] %v2958
    %3131 = vst [vmem:[#allocation8 + $0xa0] sm:$0xff] %v2963
    %3132 = vst [vmem:[#allocation8 + $0xa8] sm:$0xff] %v2968
    %3133 = vst [vmem:[#allocation8 + $0xb0] sm:$0xff] %v2973
    %3134 = vst [vmem:[#allocation8 + $0xb8] sm:$0xff] %v2978
    %3135 = vst [vmem:[#allocation8 + $0xc0] sm:$0xff] %v2983
    %3136 = vst [vmem:[#allocation8 + $0xc8] sm:$0xff] %v2988
    %3137 = vst [vmem:[#allocation8 + $0xd0] sm:$0xff] %v2993
    %3138 = vst [vmem:[#allocation8 + $0xd8] sm:$0xff] %v2998
    %3139 = vst [vmem:[#allocation8 + $0xe0] sm:$0xff] %v3003
    %3140 = vst [vmem:[#allocation8 + $0xe8] sm:$0xff] %v3008
    %3141 = vst [vmem:[#allocation8 + $0xf0] sm:$0xff] %v3013
    %3142 = vst [vmem:[#allocation8 + $0xf8] sm:$0xff] %v3018
    %3143 = vst [vmem:[#allocation8 + $0x100] sm:$0xff] %v3023
    %3144 = vst [vmem:[#allocation8 + $0x108] sm:$0xff] %v3028
    %3145 = vst [vmem:[#allocation8 + $0x110] sm:$0xff] %v3033
    %3146 = vst [vmem:[#allocation8 + $0x118] sm:$0xff] %v3038
    %3147 = vst [vmem:[#allocation8 + $0x120] sm:$0xff] %v3043
    %3148 = vst [vmem:[#allocation8 + $0x128] sm:$0xff] %v3048
    %3149 = vst [vmem:[#allocation8 + $0x130] sm:$0xff] %v3053
    %3150 = vst [vmem:[#allocation8 + $0x138] sm:$0xff] %v3058
    %3151 = vst [vmem:[#allocation8 + $0x140] sm:$0xff] %v3063
    %3152 = vst [vmem:[#allocation8 + $0x148] sm:$0xff] %v3068
    %3153 = vst [vmem:[#allocation8 + $0x150] sm:$0xff] %v3073
    %3154 = vst [vmem:[#allocation8 + $0x158] sm:$0xff] %v3078
    %3155 = vst [vmem:[#allocation8 + $0x160] sm:$0xff] %v3083
    %3156 = vst [vmem:[#allocation8 + $0x168] sm:$0xff] %v3088
    %3157 = vst [vmem:[#allocation8 + $0x170] sm:$0xff] %v3093
    %3158 = vst [vmem:[#allocation8 + $0x178] sm:$0xff] %v3098
    %3159 = vst [vmem:[#allocation8 + $0x180] sm:$0xff] %v3103
    %3160 = vst [vmem:[#allocation8 + $0x188] sm:$0xff] %v3108
    // Predicated region
    $region26: #{tpu_custom_call.1} parent=1 // pred_check
      _
    $region27: #{tpu_custom_call.1} parent=1 // pred_check_branch
      %3162 = sbr.rel (0) target = $region29
    $region28: #{tpu_custom_call.1} parent=1 // pred_region
      %s3164 = ssub.s32 6400, 6400
      %3165 = vsyncadd [#allocation4], %s3164
      %s3166 = sshll.u32 [#allocation8], 4
      %s3167 = int_to_ptr.vmem [resolvable:$true] %s3166
      %3172 = dma.vmem_to_hbm [thread:$0]  %s3167, 6400, %s3, [#allocation4], 128, 128, 8
    $region29: #{tpu_custom_call.1} parent=1 // pred_fallthru
      _
    // Predicated region
    $region30: #{tpu_custom_call.1} parent=1 // pred_check
      _
    $region31: #{tpu_custom_call.1} parent=1 // pred_check_branch
      %3174 = sbr.rel (0) target = $region33
    $region32: #{tpu_custom_call.1} parent=1 // pred_region
      %3175 = dma.done [#allocation4], 6400
    $region33: #{tpu_custom_call.1} parent=1 // pred_fallthru
      _
    %3176 = vsyncpa [#allocation3], 1
    %3177 = vsyncpa [#allocation6], 1
    %3178 = vsyncpa [#allocation4], 1

</llo_original>
